<compile_context>
chip_gen: v7x
topology: tpu7x:2x2x1
jax: 0.10.0
libtpu: 0.0.40
codegen_flags: <defaults>
</compile_context>

<pallas_src>
import functools

import jax
import jax.numpy as jnp
from jax.experimental import pallas as pl
from jax.experimental.pallas import tpu as pltpu


def _round_up(x, m):
    return (x + m - 1) // m * m


def _pick_time_chunk(T, max_chunk=64):
    """Largest divisor of T that is <= max_chunk (so no tail padding)."""
    best = 1
    for d in range(1, min(T, max_chunk) + 1):
        if T % d == 0:
            best = d
    return best


# --------------------------------------------------------------------------
# Fused kernel: per time-chunk input projection (MXU, off the critical path)
# followed by the serial LSTM recurrence over the chunk's timesteps.
# Grid: (batch_tiles ["parallel"], time_chunks ["arbitrary"]).
# --------------------------------------------------------------------------
def lstm_fused_kernel(emb_ref, w_ih_ref, w_hh_ref, b_ref, h_last_ref,
                      xp_ref, h_ref, c_ref, *,
                      t_chunk, t_total, compute_dtype, unroll, needs_mask):
    # emb_ref   : [tc, Bt, H]   compute dtype, streamed chunk (auto double-buf)
    # w_ih_ref  : [H, 4H]       compute dtype (grid-invariant, stays in VMEM)
    # w_hh_ref  : [H, 4H]       compute dtype (grid-invariant)
    # b_ref     : [1, 4H]       f32 combined bias (b_ih + b_hh)
    # h_last_ref: [Bt, H]       f32 output (resident across the time axis)
    # xp_ref    : [tc, Bt, 4H]  f32 VMEM scratch (chunk's x-projection)
    # h_ref/c_ref: [Bt, H]      f32 VMEM scratch, persist across time chunks
    t_idx = pl.program_id(1)
    Bt, H = h_ref.shape
    G = 4 * H

    @pl.when(t_idx == 0)
    def _():
        h_ref[...] = jnp.zeros_like(h_ref)
        c_ref[...] = jnp.zeros_like(c_ref)

    # One big MXU matmul for all tc timesteps of this chunk; it sits off the
    # serial critical path (the MXU is otherwise nearly idle: the per-step
    # h @ W_hh only has M = Bt rows).
    emb2d = emb_ref[...].reshape(t_chunk * Bt, H)
    xp = jnp.dot(emb2d, w_ih_ref[...], preferred_element_type=jnp.float32)
    xp_ref[...] = (xp + b_ref[...]).reshape(t_chunk, Bt, G)

    w_hh = w_hh_ref[...]
    h0 = h_ref[...]
    c0 = c_ref[...]

    def step(i, carry):
        h, c, h_cd = carry
        # Only this [Bt, H] x [H, 4H] matmul is on the serial latency chain.
        gates = xp_ref[i] + jnp.dot(h_cd, w_hh,
                                    preferred_element_type=jnp.float32)
        i_g = jax.nn.sigmoid(gates[:, 0 * H:1 * H])
        f_g = jax.nn.sigmoid(gates[:, 1 * H:2 * H])
        g_g = jnp.tanh(gates[:, 2 * H:3 * H])
        o_g = jax.nn.sigmoid(gates[:, 3 * H:4 * H])
        c_new = f_g * c + i_g * g_g
        h_new = o_g * jnp.tanh(c_new)
        # Cast at the *end* of step i so step i+1's MXU push does not wait on
        # a fresh VPU cast.
        h_cd_new = h_new.astype(compute_dtype)
        if needs_mask:
            # Only used in the prime-T fallback (T padded to a multiple of tc).
            valid = (t_idx * t_chunk + i) < t_total
            h_new = jnp.where(valid, h_new, h)
            c_new = jnp.where(valid, c_new, c)
            h_cd_new = jnp.where(valid, h_cd_new, h_cd)
        return h_new, c_new, h_cd_new

    h_f, c_f, _ = jax.lax.fori_loop(
        0, t_chunk, step, (h0, c0, h0.astype(compute_dtype)), unroll=unroll)

    h_ref[...] = h_f
    c_ref[...] = c_f
    # Output block has a constant index map over the time axis (resident in
    # VMEM); writing it every chunk is a negligible VMEM store and guarantees
    # the final value regardless of writeback scheduling.
    h_last_ref[...] = h_f


# --------------------------------------------------------------------------
# Wrapper
# --------------------------------------------------------------------------
def rnn_lstm_forward(x_tokens, params, *, hidden_size, output_size,
                     compute_dtype=jnp.float32, max_chunk=64, unroll=8):
    """x_tokens: int32 [B, T] token ids. Returns [B, output_size] float32."""
    emb_table = params["embedding"]          # [V, H]  f32
    w_ih = params["w_ih"]                    # [H, 4H]
    w_hh = params["w_hh"]                    # [H, 4H]
    b = params["b"]                          # [1, 4H] combined bias
    w_fc = params["w_fc"]                    # [H, O]
    b_fc = params["b_fc"]                    # [1, O]

    B, T = x_tokens.shape
    H = hidden_size
    G = 4 * H

    # Embedding gather: table cast ONCE to compute dtype before the gather
    # (halves gather writeback + kernel read on the bf16 path), gathered
    # time-major so no [B,T,H]->[T,B,H] transpose pass over HBM.
    # TODO(synk): the token-id row gather itself stays in XLA; a Pallas
    # version would need a manual per-row DMA gather kernel.
    emb_tm = emb_table.astype(compute_dtype)[x_tokens.T]     # [T, B, H]

    # ---- time chunking: prefer a divisor of T so no padding/masking -------
    tc = _pick_time_chunk(T, max_chunk)
    if tc < min(8, T):
        # Pathological T (e.g. prime): pad to a multiple and mask the tail.
        tc = min(max_chunk, T)
    T_pad = _round_up(T, tc)
    needs_mask = T_pad != T
    if needs_mask:
        emb_tm = jnp.pad(emb_tm, ((0, T_pad - T), (0, 0), (0, 0)))
    n_chunks = T_pad // tc

    # ---- batch tiling: 2 independent tiles for v7x's two TensorCores ------
    if B >= 16 and B % 2 == 0 and (B // 2) % 8 == 0:
        Bt = B // 2
    else:
        Bt = B
    n_btiles = B // Bt

    kernel = functools.partial(
        lstm_fused_kernel, t_chunk=tc, t_total=T, compute_dtype=compute_dtype,
        unroll=min(unroll, tc), needs_mask=needs_mask)

    # VMEM footprint per core: 2 x (tc*Bt*H) emb chunk bufs + tc*Bt*4H f32
    # xp scratch + 2 x (H*4H) weights + 2 x (Bt*H) state — a few MiB at
    # tc=64, comfortably inside v7x's 32 MiB default scoped VMEM.
    h_last = pl.pallas_call(
        kernel,
        out_shape=jax.ShapeDtypeStruct((B, H), jnp.float32),
        grid_spec=pltpu.PrefetchScalarGridSpec(
            num_scalar_prefetch=0,
            grid=(n_btiles, n_chunks),
            in_specs=[
                pl.BlockSpec((tc, Bt, H), lambda bi, ti: (ti, bi, 0)),
                pl.BlockSpec((H, G), lambda bi, ti: (0, 0)),
                pl.BlockSpec((H, G), lambda bi, ti: (0, 0)),
                pl.BlockSpec((1, G), lambda bi, ti: (0, 0)),
            ],
            out_specs=pl.BlockSpec((Bt, H), lambda bi, ti: (bi, 0)),
            scratch_shapes=[
                pltpu.VMEM((tc, Bt, G), jnp.float32),   # xp (chunk projection)
                pltpu.VMEM((Bt, H), jnp.float32),       # h
                pltpu.VMEM((Bt, H), jnp.float32),       # c
            ]),
        compiler_params=pltpu.CompilerParams(
            dimension_semantics=("parallel", "arbitrary")),
    )(emb_tm, w_ih.astype(compute_dtype), w_hh.astype(compute_dtype),
      b.astype(jnp.float32))

    # Final FC is a tiny [B,H]x[H,2] matmul: keep it in XLA so the kernel's
    # output store stays lane-dense.
    return h_last @ w_fc + b_fc


# --------------------------------------------------------------------------
# Pure-JAX reference (same forward semantics as the PyTorch module)
# --------------------------------------------------------------------------
def reference_forward(x_tokens, params, *, hidden_size):
    H = hidden_size
    emb = params["embedding"][x_tokens]                  # [B, T, H]
    B, T, _ = emb.shape
    w_ih, w_hh, b = params["w_ih"], params["w_hh"], params["b"]

    def step(carry, x_t):
        h, c = carry
        gates = x_t @ w_ih + h @ w_hh + b
        i_g = jax.nn.sigmoid(gates[:, 0 * H:1 * H])
        f_g = jax.nn.sigmoid(gates[:, 1 * H:2 * H])
        g_g = jnp.tanh(gates[:, 2 * H:3 * H])
        o_g = jax.nn.sigmoid(gates[:, 3 * H:4 * H])
        c_new = f_g * c + i_g * g_g
        h_new = o_g * jnp.tanh(c_new)
        return (h_new, c_new), None

    h0 = jnp.zeros((B, H), jnp.float32)
    c0 = jnp.zeros((B, H), jnp.float32)
    (h_last, _), _ = jax.lax.scan(step, (h0, c0), jnp.transpose(emb, (1, 0, 2)))
    return h_last @ params["w_fc"] + params["b_fc"]


def init_params(key, *, vocab_size, hidden_size, output_size):
    H = hidden_size
    ks = jax.random.split(key, 6)
    scale = 1.0 / jnp.sqrt(H)
    return {
        "embedding": jax.random.normal(ks[0], (vocab_size, H), jnp.float32),
        # torch stores weight_ih_l0 as [4H, H]; we keep the transposed [H, 4H].
        "w_ih": jax.random.uniform(ks[1], (H, 4 * H), jnp.float32, -scale, scale),
        "w_hh": jax.random.uniform(ks[2], (H, 4 * H), jnp.float32, -scale, scale),
        # combined bias b_ih + b_hh, kept 2D for broadcasting on TPU.
        "b": jax.random.uniform(ks[3], (1, 4 * H), jnp.float32, -scale, scale),
        # torch fc.weight is [O, H]; we keep the transposed [H, O].
        "w_fc": jax.random.uniform(ks[4], (H, output_size), jnp.float32, -scale, scale),
        "b_fc": jax.random.uniform(ks[5], (1, output_size), jnp.float32, -scale, scale),
    }


if __name__ == "__main__":
    # Small synthetic shapes (the real module uses BERT vocab + hidden=128).
    VOCAB = 64
    HIDDEN = 32
    OUTPUT = 2
    BATCH = 8
    SEQ = 8

    key = jax.random.PRNGKey(0)
    pkey, xkey = jax.random.split(key)
    params = init_params(pkey, vocab_size=VOCAB, hidden_size=HIDDEN,
                         output_size=OUTPUT)
    x = jax.random.randint(xkey, (BATCH, SEQ), 0, VOCAB, dtype=jnp.int32)

    ref = reference_forward(x, params, hidden_size=HIDDEN)

    # f32 path: strict parity with the reference.
    out_f32 = rnn_lstm_forward(x, params, hidden_size=HIDDEN,
                               output_size=OUTPUT,
                               compute_dtype=jnp.float32)
    out_f32 = jax.block_until_ready(out_f32)
    assert out_f32.shape == (BATCH, OUTPUT)
    assert jnp.allclose(out_f32, ref, atol=1e-5, rtol=1e-5), (out_f32, ref)

    # bf16 matmul operands / f32 accumulation (v6e & v7x fast path).
    # h/c state and gate math remain f32, so error does not compound with T.
    out_bf16 = rnn_lstm_forward(x, params, hidden_size=HIDDEN,
                                output_size=OUTPUT,
                                compute_dtype=jnp.bfloat16)
    out_bf16 = jax.block_until_ready(out_bf16)
    assert out_bf16.shape == (BATCH, OUTPUT)
    assert jnp.allclose(out_bf16, ref, atol=1e-1, rtol=1e-1), (out_bf16, ref)

    print("KERNEL_OK")
</pallas_src>

<mosaic_0001>
module attributes {stable_mosaic.version = 11 : i64} {
  func.func @lstm_fused_kernel(%arg0: i32, %arg1: i32, %arg2: memref<8x8x32xf32, #tpu.memory_space<vmem>>, %arg3: memref<32x128xf32, #tpu.memory_space<vmem>>, %arg4: memref<32x128xf32, #tpu.memory_space<vmem>>, %arg5: memref<1x128xf32, #tpu.memory_space<vmem>>, %arg6: memref<8x32xf32, #tpu.memory_space<vmem>>, %arg7: memref<8x8x128xf32, #tpu.memory_space<vmem>>, %arg8: memref<8x32xf32, #tpu.memory_space<vmem>>, %arg9: memref<8x32xf32, #tpu.memory_space<vmem>>) attributes {dimension_semantics = [#tpu.dimension_semantics<parallel>, #tpu.dimension_semantics<arbitrary>], iteration_bounds = array<i64: 1, 1>, scalar_prefetch = 0 : i64, scratch_operands = 3 : i64, tpu.core_type = #tpu.core_type<tc>, window_params = [{transform_indices = @transform_0, window_bounds = array<i64: 8, 8, 32>}, {pipeline_mode = #tpu.pipeline_mode<synchronous>, transform_indices = @transform_1, window_bounds = array<i64: 32, 128>}, {pipeline_mode = #tpu.pipeline_mode<synchronous>, transform_indices = @transform_2, window_bounds = array<i64: 32, 128>}, {pipeline_mode = #tpu.pipeline_mode<synchronous>, transform_indices = @transform_3, window_bounds = array<i64: 1, 128>}, {transform_indices = @transform_4, window_bounds = array<i64: 8, 32>}]} {
    %c0_i32 = arith.constant 0 : i32
    %0 = arith.cmpi eq, %arg1, %c0_i32 : i32
    %1 = arith.extui %0 : i1 to i32
    %c0_i32_0 = arith.constant 0 : i32
    %2 = arith.cmpi ne, %1, %c0_i32_0 : i32
    scf.if %2 {
      %cst_71 = arith.constant 0.000000e+00 : f32
      %258 = vector.broadcast %cst_71 : f32 to vector<8x32xf32>
      %c0_72 = arith.constant 0 : index
      %c0_73 = arith.constant 0 : index
      %259 = vector.load %arg8[%c0_72, %c0_73] : memref<8x32xf32, #tpu.memory_space<vmem>>, vector<8x32xf32>
      tpu.vector_store %arg8[%c0_72, %c0_73], %258 {strides = array<i32>} : memref<8x32xf32, #tpu.memory_space<vmem>>, vector<8x32xf32>,
      %cst_74 = arith.constant 0.000000e+00 : f32
      %260 = vector.broadcast %cst_74 : f32 to vector<8x32xf32>
      %c0_75 = arith.constant 0 : index
      %c0_76 = arith.constant 0 : index
      %261 = vector.load %arg9[%c0_75, %c0_76] : memref<8x32xf32, #tpu.memory_space<vmem>>, vector<8x32xf32>
      tpu.vector_store %arg9[%c0_75, %c0_76], %260 {strides = array<i32>} : memref<8x32xf32, #tpu.memory_space<vmem>>, vector<8x32xf32>,
    } else {
    }
    %c0 = arith.constant 0 : index
    %c0_1 = arith.constant 0 : index
    %c0_2 = arith.constant 0 : index
    %3 = vector.load %arg2[%c0, %c0_1, %c0_2] : memref<8x8x32xf32, #tpu.memory_space<vmem>>, vector<8x8x32xf32>
    %4 = vector.shape_cast %3 : vector<8x8x32xf32> to vector<64x32xf32>
    %c0_3 = arith.constant 0 : index
    %c0_4 = arith.constant 0 : index
    %5 = vector.load %arg3[%c0_3, %c0_4] : memref<32x128xf32, #tpu.memory_space<vmem>>, vector<32x128xf32>
    %cst = arith.constant dense<0.000000e+00> : vector<64x128xf32>
    %6 = tpu.matmul %4, %5, %cst {dimension_numbers = #tpu.dot_dimension_numbers<[1], [0], [0], [1], [0, 0, 1, 1], [], []>} : vector<64x32xf32>, vector<32x128xf32>, vector<64x128xf32> -> vector<64x128xf32>
    %c0_5 = arith.constant 0 : index
    %c0_6 = arith.constant 0 : index
    %7 = vector.load %arg5[%c0_5, %c0_6] : memref<1x128xf32, #tpu.memory_space<vmem>>, vector<1x128xf32>
    %8 = vector.broadcast %7 : vector<1x128xf32> to vector<64x128xf32>
    %9 = arith.addf %6, %8 : vector<64x128xf32>
    %10 = vector.shape_cast %9 : vector<64x128xf32> to vector<8x8x128xf32>
    %c0_7 = arith.constant 0 : index
    %c0_8 = arith.constant 0 : index
    %c0_9 = arith.constant 0 : index
    %11 = vector.load %arg7[%c0_7, %c0_8, %c0_9] : memref<8x8x128xf32, #tpu.memory_space<vmem>>, vector<8x8x128xf32>
    tpu.vector_store %arg7[%c0_7, %c0_8, %c0_9], %10 {strides = array<i32>} : memref<8x8x128xf32, #tpu.memory_space<vmem>>, vector<8x8x128xf32>,
    %c0_10 = arith.constant 0 : index
    %c0_11 = arith.constant 0 : index
    %12 = vector.load %arg4[%c0_10, %c0_11] : memref<32x128xf32, #tpu.memory_space<vmem>>, vector<32x128xf32>
    %c0_12 = arith.constant 0 : index
    %c0_13 = arith.constant 0 : index
    %13 = vector.load %arg8[%c0_12, %c0_13] : memref<8x32xf32, #tpu.memory_space<vmem>>, vector<8x32xf32>
    %c0_14 = arith.constant 0 : index
    %c0_15 = arith.constant 0 : index
    %14 = vector.load %arg9[%c0_14, %c0_15] : memref<8x32xf32, #tpu.memory_space<vmem>>, vector<8x32xf32>
    %c0_i32_16 = arith.constant 0 : i32
    %15 = arith.index_cast %c0_i32_16 : i32 to index
    %c0_17 = arith.constant 0 : index
    %c0_18 = arith.constant 0 : index
    %16 = vector.load %arg7[%15, %c0_17, %c0_18] : memref<8x8x128xf32, #tpu.memory_space<vmem>>, vector<1x8x128xf32>
    %17 = vector.shape_cast %16 : vector<1x8x128xf32> to vector<8x128xf32>
    %cst_19 = arith.constant dense<0.000000e+00> : vector<8x128xf32>
    %18 = tpu.matmul %13, %12, %cst_19 {dimension_numbers = #tpu.dot_dimension_numbers<[1], [0], [0], [1], [0, 0, 1, 1], [], []>} : vector<8x32xf32>, vector<32x128xf32>, vector<8x128xf32> -> vector<8x128xf32>
    %19 = arith.addf %17, %18 : vector<8x128xf32>
    %20 = vector.extract_strided_slice %19 {offsets = [0, 0], sizes = [8, 32], strides = [1, 1]} : vector<8x128xf32> to vector<8x32xf32>
    %21 = arith.negf %20 : vector<8x32xf32>
    %22 = math.exp %21 : vector<8x32xf32>
    %cst_20 = arith.constant 1.000000e+00 : f32
    %23 = vector.broadcast %cst_20 : f32 to vector<8x32xf32>
    %24 = arith.addf %23, %22 : vector<8x32xf32>
    %25 = arith.divf %23, %24 : vector<8x32xf32>
    %26 = vector.extract_strided_slice %19 {offsets = [0, 32], sizes = [8, 32], strides = [1, 1]} : vector<8x128xf32> to vector<8x32xf32>
    %27 = arith.negf %26 : vector<8x32xf32>
    %28 = math.exp %27 : vector<8x32xf32>
    %cst_21 = arith.constant 1.000000e+00 : f32
    %29 = vector.broadcast %cst_21 : f32 to vector<8x32xf32>
    %30 = arith.addf %29, %28 : vector<8x32xf32>
    %31 = arith.divf %29, %30 : vector<8x32xf32>
    %32 = vector.extract_strided_slice %19 {offsets = [0, 64], sizes = [8, 32], strides = [1, 1]} : vector<8x128xf32> to vector<8x32xf32>
    %33 = math.tanh %32 : vector<8x32xf32>
    %34 = vector.extract_strided_slice %19 {offsets = [0, 96], sizes = [8, 32], strides = [1, 1]} : vector<8x128xf32> to vector<8x32xf32>
    %35 = arith.negf %34 : vector<8x32xf32>
    %36 = math.exp %35 : vector<8x32xf32>
    %cst_22 = arith.constant 1.000000e+00 : f32
    %37 = vector.broadcast %cst_22 : f32 to vector<8x32xf32>
    %38 = arith.addf %37, %36 : vector<8x32xf32>
    %39 = arith.divf %37, %38 : vector<8x32xf32>
    %40 = arith.mulf %31, %14 : vector<8x32xf32>
    %41 = arith.mulf %25, %33 : vector<8x32xf32>
    %42 = arith.addf %40, %41 : vector<8x32xf32>
    %43 = math.tanh %42 : vector<8x32xf32>
    %44 = arith.mulf %39, %43 : vector<8x32xf32>
    %c1_i32 = arith.constant 1 : i32
    %45 = arith.index_cast %c1_i32 : i32 to index
    %c0_23 = arith.constant 0 : index
    %c0_24 = arith.constant 0 : index
    %46 = vector.load %arg7[%45, %c0_23, %c0_24] : memref<8x8x128xf32, #tpu.memory_space<vmem>>, vector<1x8x128xf32>
    %47 = vector.shape_cast %46 : vector<1x8x128xf32> to vector<8x128xf32>
    %cst_25 = arith.constant dense<0.000000e+00> : vector<8x128xf32>
    %48 = tpu.matmul %44, %12, %cst_25 {dimension_numbers = #tpu.dot_dimension_numbers<[1], [0], [0], [1], [0, 0, 1, 1], [], []>} : vector<8x32xf32>, vector<32x128xf32>, vector<8x128xf32> -> vector<8x128xf32>
    %49 = arith.addf %47, %48 : vector<8x128xf32>
    %50 = vector.extract_strided_slice %49 {offsets = [0, 0], sizes = [8, 32], strides = [1, 1]} : vector<8x128xf32> to vector<8x32xf32>
    %51 = arith.negf %50 : vector<8x32xf32>
    %52 = math.exp %51 : vector<8x32xf32>
    %cst_26 = arith.constant 1.000000e+00 : f32
    %53 = vector.broadcast %cst_26 : f32 to vector<8x32xf32>
    %54 = arith.addf %53, %52 : vector<8x32xf32>
    %55 = arith.divf %53, %54 : vector<8x32xf32>
    %56 = vector.extract_strided_slice %49 {offsets = [0, 32], sizes = [8, 32], strides = [1, 1]} : vector<8x128xf32> to vector<8x32xf32>
    %57 = arith.negf %56 : vector<8x32xf32>
    %58 = math.exp %57 : vector<8x32xf32>
    %cst_27 = arith.constant 1.000000e+00 : f32
    %59 = vector.broadcast %cst_27 : f32 to vector<8x32xf32>
    %60 = arith.addf %59, %58 : vector<8x32xf32>
    %61 = arith.divf %59, %60 : vector<8x32xf32>
    %62 = vector.extract_strided_slice %49 {offsets = [0, 64], sizes = [8, 32], strides = [1, 1]} : vector<8x128xf32> to vector<8x32xf32>
    %63 = math.tanh %62 : vector<8x32xf32>
    %64 = vector.extract_strided_slice %49 {offsets = [0, 96], sizes = [8, 32], strides = [1, 1]} : vector<8x128xf32> to vector<8x32xf32>
    %65 = arith.negf %64 : vector<8x32xf32>
    %66 = math.exp %65 : vector<8x32xf32>
    %cst_28 = arith.constant 1.000000e+00 : f32
    %67 = vector.broadcast %cst_28 : f32 to vector<8x32xf32>
    %68 = arith.addf %67, %66 : vector<8x32xf32>
    %69 = arith.divf %67, %68 : vector<8x32xf32>
    %70 = arith.mulf %61, %42 : vector<8x32xf32>
    %71 = arith.mulf %55, %63 : vector<8x32xf32>
    %72 = arith.addf %70, %71 : vector<8x32xf32>
    %73 = math.tanh %72 : vector<8x32xf32>
    %74 = arith.mulf %69, %73 : vector<8x32xf32>
    %c2_i32 = arith.constant 2 : i32
    %75 = arith.index_cast %c2_i32 : i32 to index
    %c0_29 = arith.constant 0 : index
    %c0_30 = arith.constant 0 : index
    %76 = vector.load %arg7[%75, %c0_29, %c0_30] : memref<8x8x128xf32, #tpu.memory_space<vmem>>, vector<1x8x128xf32>
    %77 = vector.shape_cast %76 : vector<1x8x128xf32> to vector<8x128xf32>
    %cst_31 = arith.constant dense<0.000000e+00> : vector<8x128xf32>
    %78 = tpu.matmul %74, %12, %cst_31 {dimension_numbers = #tpu.dot_dimension_numbers<[1], [0], [0], [1], [0, 0, 1, 1], [], []>} : vector<8x32xf32>, vector<32x128xf32>, vector<8x128xf32> -> vector<8x128xf32>
    %79 = arith.addf %77, %78 : vector<8x128xf32>
    %80 = vector.extract_strided_slice %79 {offsets = [0, 0], sizes = [8, 32], strides = [1, 1]} : vector<8x128xf32> to vector<8x32xf32>
    %81 = arith.negf %80 : vector<8x32xf32>
    %82 = math.exp %81 : vector<8x32xf32>
    %cst_32 = arith.constant 1.000000e+00 : f32
    %83 = vector.broadcast %cst_32 : f32 to vector<8x32xf32>
    %84 = arith.addf %83, %82 : vector<8x32xf32>
    %85 = arith.divf %83, %84 : vector<8x32xf32>
    %86 = vector.extract_strided_slice %79 {offsets = [0, 32], sizes = [8, 32], strides = [1, 1]} : vector<8x128xf32> to vector<8x32xf32>
    %87 = arith.negf %86 : vector<8x32xf32>
    %88 = math.exp %87 : vector<8x32xf32>
    %cst_33 = arith.constant 1.000000e+00 : f32
    %89 = vector.broadcast %cst_33 : f32 to vector<8x32xf32>
    %90 = arith.addf %89, %88 : vector<8x32xf32>
    %91 = arith.divf %89, %90 : vector<8x32xf32>
    %92 = vector.extract_strided_slice %79 {offsets = [0, 64], sizes = [8, 32], strides = [1, 1]} : vector<8x128xf32> to vector<8x32xf32>
    %93 = math.tanh %92 : vector<8x32xf32>
    %94 = vector.extract_strided_slice %79 {offsets = [0, 96], sizes = [8, 32], strides = [1, 1]} : vector<8x128xf32> to vector<8x32xf32>
    %95 = arith.negf %94 : vector<8x32xf32>
    %96 = math.exp %95 : vector<8x32xf32>
    %cst_34 = arith.constant 1.000000e+00 : f32
    %97 = vector.broadcast %cst_34 : f32 to vector<8x32xf32>
    %98 = arith.addf %97, %96 : vector<8x32xf32>
    %99 = arith.divf %97, %98 : vector<8x32xf32>
    %100 = arith.mulf %91, %72 : vector<8x32xf32>
    %101 = arith.mulf %85, %93 : vector<8x32xf32>
    %102 = arith.addf %100, %101 : vector<8x32xf32>
    %103 = math.tanh %102 : vector<8x32xf32>
    %104 = arith.mulf %99, %103 : vector<8x32xf32>
    %c3_i32 = arith.constant 3 : i32
    %105 = arith.index_cast %c3_i32 : i32 to index
    %c0_35 = arith.constant 0 : index
    %c0_36 = arith.constant 0 : index
    %106 = vector.load %arg7[%105, %c0_35, %c0_36] : memref<8x8x128xf32, #tpu.memory_space<vmem>>, vector<1x8x128xf32>
    %107 = vector.shape_cast %106 : vector<1x8x128xf32> to vector<8x128xf32>
    %cst_37 = arith.constant dense<0.000000e+00> : vector<8x128xf32>
    %108 = tpu.matmul %104, %12, %cst_37 {dimension_numbers = #tpu.dot_dimension_numbers<[1], [0], [0], [1], [0, 0, 1, 1], [], []>} : vector<8x32xf32>, vector<32x128xf32>, vector<8x128xf32> -> vector<8x128xf32>
    %109 = arith.addf %107, %108 : vector<8x128xf32>
    %110 = vector.extract_strided_slice %109 {offsets = [0, 0], sizes = [8, 32], strides = [1, 1]} : vector<8x128xf32> to vector<8x32xf32>
    %111 = arith.negf %110 : vector<8x32xf32>
    %112 = math.exp %111 : vector<8x32xf32>
    %cst_38 = arith.constant 1.000000e+00 : f32
    %113 = vector.broadcast %cst_38 : f32 to vector<8x32xf32>
    %114 = arith.addf %113, %112 : vector<8x32xf32>
    %115 = arith.divf %113, %114 : vector<8x32xf32>
    %116 = vector.extract_strided_slice %109 {offsets = [0, 32], sizes = [8, 32], strides = [1, 1]} : vector<8x128xf32> to vector<8x32xf32>
    %117 = arith.negf %116 : vector<8x32xf32>
    %118 = math.exp %117 : vector<8x32xf32>
    %cst_39 = arith.constant 1.000000e+00 : f32
    %119 = vector.broadcast %cst_39 : f32 to vector<8x32xf32>
    %120 = arith.addf %119, %118 : vector<8x32xf32>
    %121 = arith.divf %119, %120 : vector<8x32xf32>
    %122 = vector.extract_strided_slice %109 {offsets = [0, 64], sizes = [8, 32], strides = [1, 1]} : vector<8x128xf32> to vector<8x32xf32>
    %123 = math.tanh %122 : vector<8x32xf32>
    %124 = vector.extract_strided_slice %109 {offsets = [0, 96], sizes = [8, 32], strides = [1, 1]} : vector<8x128xf32> to vector<8x32xf32>
    %125 = arith.negf %124 : vector<8x32xf32>
    %126 = math.exp %125 : vector<8x32xf32>
    %cst_40 = arith.constant 1.000000e+00 : f32
    %127 = vector.broadcast %cst_40 : f32 to vector<8x32xf32>
    %128 = arith.addf %127, %126 : vector<8x32xf32>
    %129 = arith.divf %127, %128 : vector<8x32xf32>
    %130 = arith.mulf %121, %102 : vector<8x32xf32>
    %131 = arith.mulf %115, %123 : vector<8x32xf32>
    %132 = arith.addf %130, %131 : vector<8x32xf32>
    %133 = math.tanh %132 : vector<8x32xf32>
    %134 = arith.mulf %129, %133 : vector<8x32xf32>
    %c4_i32 = arith.constant 4 : i32
    %135 = arith.index_cast %c4_i32 : i32 to index
    %c0_41 = arith.constant 0 : index
    %c0_42 = arith.constant 0 : index
    %136 = vector.load %arg7[%135, %c0_41, %c0_42] : memref<8x8x128xf32, #tpu.memory_space<vmem>>, vector<1x8x128xf32>
    %137 = vector.shape_cast %136 : vector<1x8x128xf32> to vector<8x128xf32>
    %cst_43 = arith.constant dense<0.000000e+00> : vector<8x128xf32>
    %138 = tpu.matmul %134, %12, %cst_43 {dimension_numbers = #tpu.dot_dimension_numbers<[1], [0], [0], [1], [0, 0, 1, 1], [], []>} : vector<8x32xf32>, vector<32x128xf32>, vector<8x128xf32> -> vector<8x128xf32>
    %139 = arith.addf %137, %138 : vector<8x128xf32>
    %140 = vector.extract_strided_slice %139 {offsets = [0, 0], sizes = [8, 32], strides = [1, 1]} : vector<8x128xf32> to vector<8x32xf32>
    %141 = arith.negf %140 : vector<8x32xf32>
    %142 = math.exp %141 : vector<8x32xf32>
    %cst_44 = arith.constant 1.000000e+00 : f32
    %143 = vector.broadcast %cst_44 : f32 to vector<8x32xf32>
    %144 = arith.addf %143, %142 : vector<8x32xf32>
    %145 = arith.divf %143, %144 : vector<8x32xf32>
    %146 = vector.extract_strided_slice %139 {offsets = [0, 32], sizes = [8, 32], strides = [1, 1]} : vector<8x128xf32> to vector<8x32xf32>
    %147 = arith.negf %146 : vector<8x32xf32>
    %148 = math.exp %147 : vector<8x32xf32>
    %cst_45 = arith.constant 1.000000e+00 : f32
    %149 = vector.broadcast %cst_45 : f32 to vector<8x32xf32>
    %150 = arith.addf %149, %148 : vector<8x32xf32>
    %151 = arith.divf %149, %150 : vector<8x32xf32>
    %152 = vector.extract_strided_slice %139 {offsets = [0, 64], sizes = [8, 32], strides = [1, 1]} : vector<8x128xf32> to vector<8x32xf32>
    %153 = math.tanh %152 : vector<8x32xf32>
    %154 = vector.extract_strided_slice %139 {offsets = [0, 96], sizes = [8, 32], strides = [1, 1]} : vector<8x128xf32> to vector<8x32xf32>
    %155 = arith.negf %154 : vector<8x32xf32>
    %156 = math.exp %155 : vector<8x32xf32>
    %cst_46 = arith.constant 1.000000e+00 : f32
    %157 = vector.broadcast %cst_46 : f32 to vector<8x32xf32>
    %158 = arith.addf %157, %156 : vector<8x32xf32>
    %159 = arith.divf %157, %158 : vector<8x32xf32>
    %160 = arith.mulf %151, %132 : vector<8x32xf32>
    %161 = arith.mulf %145, %153 : vector<8x32xf32>
    %162 = arith.addf %160, %161 : vector<8x32xf32>
    %163 = math.tanh %162 : vector<8x32xf32>
    %164 = arith.mulf %159, %163 : vector<8x32xf32>
    %c5_i32 = arith.constant 5 : i32
    %165 = arith.index_cast %c5_i32 : i32 to index
    %c0_47 = arith.constant 0 : index
    %c0_48 = arith.constant 0 : index
    %166 = vector.load %arg7[%165, %c0_47, %c0_48] : memref<8x8x128xf32, #tpu.memory_space<vmem>>, vector<1x8x128xf32>
    %167 = vector.shape_cast %166 : vector<1x8x128xf32> to vector<8x128xf32>
    %cst_49 = arith.constant dense<0.000000e+00> : vector<8x128xf32>
    %168 = tpu.matmul %164, %12, %cst_49 {dimension_numbers = #tpu.dot_dimension_numbers<[1], [0], [0], [1], [0, 0, 1, 1], [], []>} : vector<8x32xf32>, vector<32x128xf32>, vector<8x128xf32> -> vector<8x128xf32>
    %169 = arith.addf %167, %168 : vector<8x128xf32>
    %170 = vector.extract_strided_slice %169 {offsets = [0, 0], sizes = [8, 32], strides = [1, 1]} : vector<8x128xf32> to vector<8x32xf32>
    %171 = arith.negf %170 : vector<8x32xf32>
    %172 = math.exp %171 : vector<8x32xf32>
    %cst_50 = arith.constant 1.000000e+00 : f32
    %173 = vector.broadcast %cst_50 : f32 to vector<8x32xf32>
    %174 = arith.addf %173, %172 : vector<8x32xf32>
    %175 = arith.divf %173, %174 : vector<8x32xf32>
    %176 = vector.extract_strided_slice %169 {offsets = [0, 32], sizes = [8, 32], strides = [1, 1]} : vector<8x128xf32> to vector<8x32xf32>
    %177 = arith.negf %176 : vector<8x32xf32>
    %178 = math.exp %177 : vector<8x32xf32>
    %cst_51 = arith.constant 1.000000e+00 : f32
    %179 = vector.broadcast %cst_51 : f32 to vector<8x32xf32>
    %180 = arith.addf %179, %178 : vector<8x32xf32>
    %181 = arith.divf %179, %180 : vector<8x32xf32>
    %182 = vector.extract_strided_slice %169 {offsets = [0, 64], sizes = [8, 32], strides = [1, 1]} : vector<8x128xf32> to vector<8x32xf32>
    %183 = math.tanh %182 : vector<8x32xf32>
    %184 = vector.extract_strided_slice %169 {offsets = [0, 96], sizes = [8, 32], strides = [1, 1]} : vector<8x128xf32> to vector<8x32xf32>
    %185 = arith.negf %184 : vector<8x32xf32>
    %186 = math.exp %185 : vector<8x32xf32>
    %cst_52 = arith.constant 1.000000e+00 : f32
    %187 = vector.broadcast %cst_52 : f32 to vector<8x32xf32>
    %188 = arith.addf %187, %186 : vector<8x32xf32>
    %189 = arith.divf %187, %188 : vector<8x32xf32>
    %190 = arith.mulf %181, %162 : vector<8x32xf32>
    %191 = arith.mulf %175, %183 : vector<8x32xf32>
    %192 = arith.addf %190, %191 : vector<8x32xf32>
    %193 = math.tanh %192 : vector<8x32xf32>
    %194 = arith.mulf %189, %193 : vector<8x32xf32>
    %c6_i32 = arith.constant 6 : i32
    %195 = arith.index_cast %c6_i32 : i32 to index
    %c0_53 = arith.constant 0 : index
    %c0_54 = arith.constant 0 : index
    %196 = vector.load %arg7[%195, %c0_53, %c0_54] : memref<8x8x128xf32, #tpu.memory_space<vmem>>, vector<1x8x128xf32>
    %197 = vector.shape_cast %196 : vector<1x8x128xf32> to vector<8x128xf32>
    %cst_55 = arith.constant dense<0.000000e+00> : vector<8x128xf32>
    %198 = tpu.matmul %194, %12, %cst_55 {dimension_numbers = #tpu.dot_dimension_numbers<[1], [0], [0], [1], [0, 0, 1, 1], [], []>} : vector<8x32xf32>, vector<32x128xf32>, vector<8x128xf32> -> vector<8x128xf32>
    %199 = arith.addf %197, %198 : vector<8x128xf32>
    %200 = vector.extract_strided_slice %199 {offsets = [0, 0], sizes = [8, 32], strides = [1, 1]} : vector<8x128xf32> to vector<8x32xf32>
    %201 = arith.negf %200 : vector<8x32xf32>
    %202 = math.exp %201 : vector<8x32xf32>
    %cst_56 = arith.constant 1.000000e+00 : f32
    %203 = vector.broadcast %cst_56 : f32 to vector<8x32xf32>
    %204 = arith.addf %203, %202 : vector<8x32xf32>
    %205 = arith.divf %203, %204 : vector<8x32xf32>
    %206 = vector.extract_strided_slice %199 {offsets = [0, 32], sizes = [8, 32], strides = [1, 1]} : vector<8x128xf32> to vector<8x32xf32>
    %207 = arith.negf %206 : vector<8x32xf32>
    %208 = math.exp %207 : vector<8x32xf32>
    %cst_57 = arith.constant 1.000000e+00 : f32
    %209 = vector.broadcast %cst_57 : f32 to vector<8x32xf32>
    %210 = arith.addf %209, %208 : vector<8x32xf32>
    %211 = arith.divf %209, %210 : vector<8x32xf32>
    %212 = vector.extract_strided_slice %199 {offsets = [0, 64], sizes = [8, 32], strides = [1, 1]} : vector<8x128xf32> to vector<8x32xf32>
    %213 = math.tanh %212 : vector<8x32xf32>
    %214 = vector.extract_strided_slice %199 {offsets = [0, 96], sizes = [8, 32], strides = [1, 1]} : vector<8x128xf32> to vector<8x32xf32>
    %215 = arith.negf %214 : vector<8x32xf32>
    %216 = math.exp %215 : vector<8x32xf32>
    %cst_58 = arith.constant 1.000000e+00 : f32
    %217 = vector.broadcast %cst_58 : f32 to vector<8x32xf32>
    %218 = arith.addf %217, %216 : vector<8x32xf32>
    %219 = arith.divf %217, %218 : vector<8x32xf32>
    %220 = arith.mulf %211, %192 : vector<8x32xf32>
    %221 = arith.mulf %205, %213 : vector<8x32xf32>
    %222 = arith.addf %220, %221 : vector<8x32xf32>
    %223 = math.tanh %222 : vector<8x32xf32>
    %224 = arith.mulf %219, %223 : vector<8x32xf32>
    %c7_i32 = arith.constant 7 : i32
    %225 = arith.index_cast %c7_i32 : i32 to index
    %c0_59 = arith.constant 0 : index
    %c0_60 = arith.constant 0 : index
    %226 = vector.load %arg7[%225, %c0_59, %c0_60] : memref<8x8x128xf32, #tpu.memory_space<vmem>>, vector<1x8x128xf32>
    %227 = vector.shape_cast %226 : vector<1x8x128xf32> to vector<8x128xf32>
    %cst_61 = arith.constant dense<0.000000e+00> : vector<8x128xf32>
    %228 = tpu.matmul %224, %12, %cst_61 {dimension_numbers = #tpu.dot_dimension_numbers<[1], [0], [0], [1], [0, 0, 1, 1], [], []>} : vector<8x32xf32>, vector<32x128xf32>, vector<8x128xf32> -> vector<8x128xf32>
    %229 = arith.addf %227, %228 : vector<8x128xf32>
    %230 = vector.extract_strided_slice %229 {offsets = [0, 0], sizes = [8, 32], strides = [1, 1]} : vector<8x128xf32> to vector<8x32xf32>
    %231 = arith.negf %230 : vector<8x32xf32>
    %232 = math.exp %231 : vector<8x32xf32>
    %cst_62 = arith.constant 1.000000e+00 : f32
    %233 = vector.broadcast %cst_62 : f32 to vector<8x32xf32>
    %234 = arith.addf %233, %232 : vector<8x32xf32>
    %235 = arith.divf %233, %234 : vector<8x32xf32>
    %236 = vector.extract_strided_slice %229 {offsets = [0, 32], sizes = [8, 32], strides = [1, 1]} : vector<8x128xf32> to vector<8x32xf32>
    %237 = arith.negf %236 : vector<8x32xf32>
    %238 = math.exp %237 : vector<8x32xf32>
    %cst_63 = arith.constant 1.000000e+00 : f32
    %239 = vector.broadcast %cst_63 : f32 to vector<8x32xf32>
    %240 = arith.addf %239, %238 : vector<8x32xf32>
    %241 = arith.divf %239, %240 : vector<8x32xf32>
    %242 = vector.extract_strided_slice %229 {offsets = [0, 64], sizes = [8, 32], strides = [1, 1]} : vector<8x128xf32> to vector<8x32xf32>
    %243 = math.tanh %242 : vector<8x32xf32>
    %244 = vector.extract_strided_slice %229 {offsets = [0, 96], sizes = [8, 32], strides = [1, 1]} : vector<8x128xf32> to vector<8x32xf32>
    %245 = arith.negf %244 : vector<8x32xf32>
    %246 = math.exp %245 : vector<8x32xf32>
    %cst_64 = arith.constant 1.000000e+00 : f32
    %247 = vector.broadcast %cst_64 : f32 to vector<8x32xf32>
    %248 = arith.addf %247, %246 : vector<8x32xf32>
    %249 = arith.divf %247, %248 : vector<8x32xf32>
    %250 = arith.mulf %241, %222 : vector<8x32xf32>
    %251 = arith.mulf %235, %243 : vector<8x32xf32>
    %252 = arith.addf %250, %251 : vector<8x32xf32>
    %253 = math.tanh %252 : vector<8x32xf32>
    %254 = arith.mulf %249, %253 : vector<8x32xf32>
    %c8_i32 = arith.constant 8 : i32
    %c0_65 = arith.constant 0 : index
    %c0_66 = arith.constant 0 : index
    %255 = vector.load %arg8[%c0_65, %c0_66] : memref<8x32xf32, #tpu.memory_space<vmem>>, vector<8x32xf32>
    tpu.vector_store %arg8[%c0_65, %c0_66], %254 {strides = array<i32>} : memref<8x32xf32, #tpu.memory_space<vmem>>, vector<8x32xf32>,
    %c0_67 = arith.constant 0 : index
    %c0_68 = arith.constant 0 : index
    %256 = vector.load %arg9[%c0_67, %c0_68] : memref<8x32xf32, #tpu.memory_space<vmem>>, vector<8x32xf32>
    tpu.vector_store %arg9[%c0_67, %c0_68], %252 {strides = array<i32>} : memref<8x32xf32, #tpu.memory_space<vmem>>, vector<8x32xf32>,
    %c0_69 = arith.constant 0 : index
    %c0_70 = arith.constant 0 : index
    %257 = vector.load %arg6[%c0_69, %c0_70] : memref<8x32xf32, #tpu.memory_space<vmem>>, vector<8x32xf32>
    tpu.vector_store %arg6[%c0_69, %c0_70], %254 {strides = array<i32>} : memref<8x32xf32, #tpu.memory_space<vmem>>, vector<8x32xf32>,
    return
  }
  func.func @transform_0(%arg0: i32, %arg1: i32) -> (i32, i32, i32) {
    %c0_i32 = arith.constant 0 : i32
    %c0_i32_0 = arith.constant 0 : i32
    return %arg1, %arg0, %c0_i32 : i32, i32, i32
  }
  func.func @transform_1(%arg0: i32, %arg1: i32) -> (i32, i32) {
    %c0_i32 = arith.constant 0 : i32
    %c0_i32_0 = arith.constant 0 : i32
    %c0_i32_1 = arith.constant 0 : i32
    return %c0_i32, %c0_i32_0 : i32, i32
  }
  func.func @transform_2(%arg0: i32, %arg1: i32) -> (i32, i32) {
    %c0_i32 = arith.constant 0 : i32
    %c0_i32_0 = arith.constant 0 : i32
    %c0_i32_1 = arith.constant 0 : i32
    return %c0_i32, %c0_i32_0 : i32, i32
  }
  func.func @transform_3(%arg0: i32, %arg1: i32) -> (i32, i32) {
    %c0_i32 = arith.constant 0 : i32
    %c0_i32_0 = arith.constant 0 : i32
    %c0_i32_1 = arith.constant 0 : i32
    return %c0_i32, %c0_i32_0 : i32, i32
  }
  func.func @transform_4(%arg0: i32, %arg1: i32) -> (i32, i32) {
    %c0_i32 = arith.constant 0 : i32
    %c0_i32_0 = arith.constant 0 : i32
    return %arg0, %c0_i32 : i32, i32
  }
}

</mosaic_0001>

<llo_original>
// kernel: tpu_custom_call.1
$region0: #{tpu_custom_call.1}
  #allocation0 [shape = 'u32[]', space=smem, size = 0x4, offset = 0x4, fixed_abs, tag = 'smem constant byte address 0x4 - core index']
  #allocation1 [shape = 'u32[144,128]{1,0:T(1,128)}', space=vmem, size = 0x12000, scoped, tag = 'internal scratch']
  #allocation2 [shape = 'f32[8,8,128]{2,1,0:T(8,128)}', space=vmem, size = 0x8000, scoped, tag = 'scratch operand']
  #allocation3 [shape = 'f32[8,32]{1,0:T(8,128)}', space=vmem, size = 0x1000, scoped, tag = 'scratch operand']
  #allocation4 [shape = 'f32[8,32]{1,0:T(8,128)}', space=vmem, size = 0x1000, scoped, tag = 'scratch operand']
  %s0 = inlined_call_operand.hbm [shape: f32[8,8,32], index: 0, kind: input, shape index: {}]
  %s1 = inlined_call_operand.hbm [shape: f32[32,128], index: 1, kind: input, shape index: {}]
  %s2 = inlined_call_operand.hbm [shape: f32[32,128], index: 2, kind: input, shape index: {}]
  %s3 = inlined_call_operand.vmem [shape: f32[1,128], index: 3, kind: input, shape index: {}]
  %s4 = inlined_call_operand.hbm [shape: f32[8,32], index: 4, kind: output, shape index: {}]
  %s5 = sld [smem:[#allocation0]]
  $region42: #{tpu_custom_call.1} parent=0
    _
  %s7 = ssub.s32 1, %s5
  %s8 = scalar_select 0, %s7, %s5
  $region1: #{tpu_custom_call.1} parent=0
    #allocation5 [shape = 'u8[32768]{0}', space=vmem, size = 0x8000, scoped, tag = 'input window, operand 0, single buffered']
    #allocation6 [shape = 's32[1]{0}', space=sflag, size = 0x4, scoped, tag = 'scoped memory for tpu_custom_call.1']
    #allocation7 [shape = 's32[1]{0}', space=sflag, size = 0x4, scoped, tag = 'scoped memory for tpu_custom_call.1']
    #allocation8 [shape = 'u8[16384]{0}', space=vmem, size = 0x4000, scoped, tag = 'input window, operand 1, single buffered']
    #allocation9 [shape = 's32[1]{0}', space=sflag, size = 0x4, scoped, tag = 'scoped memory for tpu_custom_call.1']
    #allocation10 [shape = 'u8[16384]{0}', space=vmem, size = 0x4000, scoped, tag = 'input window, operand 2, single buffered']
    #allocation11 [shape = 'u8[4096]{0}', space=vmem, size = 0x1000, scoped, tag = 'output window, operand 0, single buffered']
    %9 = vsyncpa [#allocation6], 0
    %10 = vsyncpa [#allocation9], 0
    %11 = vsyncpa [#allocation7], 0
    // Predicated region
    $region2: #{tpu_custom_call.1} parent=1 // pred_check
      _
    $region3: #{tpu_custom_call.1} parent=1 // pred_check_branch
      %13 = sbr.rel (0) target = $region5
    $region4: #{tpu_custom_call.1} parent=1 // pred_region
      %s15 = ssub.s32 1024, 1024
      %16 = vsyncadd [#allocation6], %s15
      %s17 = sshll.u32 [#allocation5], 4
      %s18 = int_to_ptr.vmem [resolvable:$true] %s17
      %23 = dma.hbm_to_vmem [thread:$0]  %s0, 1024, %s18, [#allocation6], 128, 128, 8
    $region5: #{tpu_custom_call.1} parent=1 // pred_fallthru
      _
    // Predicated region
    $region6: #{tpu_custom_call.1} parent=1 // pred_check
      _
    $region7: #{tpu_custom_call.1} parent=1 // pred_check_branch
      %25 = sbr.rel (0) target = $region9
    $region8: #{tpu_custom_call.1} parent=1 // pred_region
      %s27 = ssub.s32 512, 512
      %28 = vsyncadd [#allocation9], %s27
      %s29 = sshll.u32 [#allocation8], 4
      %s30 = int_to_ptr.vmem [resolvable:$true] %s29
      %35 = dma.hbm_to_vmem [thread:$0]  %s1, 512, %s30, [#allocation9], 128, 128, 8
    $region9: #{tpu_custom_call.1} parent=1 // pred_fallthru
      _
    // Predicated region
    $region10: #{tpu_custom_call.1} parent=1 // pred_check
      _
    $region11: #{tpu_custom_call.1} parent=1 // pred_check_branch
      %37 = sbr.rel (0) target = $region13
    $region12: #{tpu_custom_call.1} parent=1 // pred_region
      %s39 = ssub.s32 512, 512
      %40 = vsyncadd [#allocation9], %s39
      %s41 = sshll.u32 [#allocation10], 4
      %s42 = int_to_ptr.vmem [resolvable:$true] %s41
      %47 = dma.hbm_to_vmem [thread:$0]  %s2, 512, %s42, [#allocation9], 128, 128, 8
    $region13: #{tpu_custom_call.1} parent=1 // pred_fallthru
      _
    // Predicated region
    $region14: #{tpu_custom_call.1} parent=1 // pred_check
      _
    $region15: #{tpu_custom_call.1} parent=1 // pred_check_branch
      %49 = sbr.rel (0) target = $region17
    $region16: #{tpu_custom_call.1} parent=1 // pred_region
      _
    $region17: #{tpu_custom_call.1} parent=1 // pred_fallthru
      _
    // Predicated region
    $region18: #{tpu_custom_call.1} parent=1 // pred_check
      _
    $region19: #{tpu_custom_call.1} parent=1 // pred_check_branch
      %51 = sbr.rel (0) target = $region21
    $region20: #{tpu_custom_call.1} parent=1 // pred_region
      %52 = dma.done [#allocation6], 1024
    $region21: #{tpu_custom_call.1} parent=1 // pred_fallthru
      _
    // Predicated region
    $region22: #{tpu_custom_call.1} parent=1 // pred_check
      _
    $region23: #{tpu_custom_call.1} parent=1 // pred_check_branch
      %54 = sbr.rel (0) target = $region25
    $region24: #{tpu_custom_call.1} parent=1 // pred_region
      %55 = dma.done [#allocation9], 512
    $region25: #{tpu_custom_call.1} parent=1 // pred_fallthru
      _
    // Predicated region
    $region26: #{tpu_custom_call.1} parent=1 // pred_check
      _
    $region27: #{tpu_custom_call.1} parent=1 // pred_check_branch
      %57 = sbr.rel (0) target = $region29
    $region28: #{tpu_custom_call.1} parent=1 // pred_region
      %58 = dma.done [#allocation9], 512
    $region29: #{tpu_custom_call.1} parent=1 // pred_fallthru
      _
    %p59 = scmp.eq.s32.totalorder 0, 0
    // Predicated region
    $region30: #{tpu_custom_call.1} parent=1 // pred_check
      %p60 = pneg %p59
    $region31: #{tpu_custom_call.1} parent=1 // pred_check_branch
      %62 = sbr.rel (%p60) target = $region33
    $region32: #{tpu_custom_call.1} parent=1 // pred_region
      %vm63 = vcmask 261120
      %64 = vst.msk [vmem:[#allocation3] sm:$0xff] %vm63, 0.0
      %65 = vst.msk [vmem:[#allocation4] sm:$0xff] %vm63, 0.0
    $region33: #{tpu_custom_call.1} parent=1 // pred_fallthru
      _
    %v66 = vld [vmem:[#allocation5] sm:$0xff]
    %v67 = vld [vmem:[#allocation5 + $0x8] sm:$0xff]
    %v68 = vld [vmem:[#allocation5 + $0x10] sm:$0xff]
    %v69 = vld [vmem:[#allocation5 + $0x18] sm:$0xff]
    %v70 = vld [vmem:[#allocation5 + $0x20] sm:$0xff]
    %v71 = vld [vmem:[#allocation5 + $0x28] sm:$0xff]
    %v72 = vld [vmem:[#allocation5 + $0x30] sm:$0xff]
    %v73 = vld [vmem:[#allocation5 + $0x38] sm:$0xff]
    %v74 = vld [vmem:[#allocation8] sm:$0xff]
    %v75 = vld [vmem:[#allocation8 + $0x8] sm:$0xff]
    %v76 = vld [vmem:[#allocation8 + $0x10] sm:$0xff]
    %v77 = vld [vmem:[#allocation8 + $0x18] sm:$0xff]
    %v78 = vld [vmem:[%s3] sm:$0x1]
    %v80 = vlaneseq
    %v81 = vshrl.u32 %v80, 7
    %v82 = vsub.s32 0, %v81
    %v83 = vrot.slane %v78, %v82
    %vm85 = vcmask 261120
    %v87 = vsel %vm85, %v66, 0
    %v90 = vsel %vm85, %v67, 0
    %v93 = vsel %vm85, %v68, 0
    %v96 = vsel %vm85, %v69, 0
    %v99 = vsel %vm85, %v70, 0
    %v102 = vsel %vm85, %v71, 0
    %v105 = vsel %vm85, %v72, 0
    %v108 = vsel %vm85, %v73, 0
    %110 = vmatprep.subr.mxu0 0.0
    %111 = vmatpush1.msra.mxu0 %v74
    %112 = vmatprep.subr.mxu0 0.0
    %113 = vmatpush1.msra.mxu0 %v75
    %114 = vmatprep.subr.mxu0 0.0
    %115 = vmatpush1.msra.mxu0 %v76
    %116 = vmatprep.subr.mxu0 0.0
    %117 = vmatpush1.msra.mxu0 %v77
    %118 = vmatprep.subr.mxu0 0.0
    %119 = vmatpush1.msra.mxu0 0.0
    %120 = vmatprep.subr.mxu0 0.0
    %121 = vmatpush1.msra.mxu0 0.0
    %122 = vmatprep.subr.mxu0 0.0
    %123 = vmatpush1.msra.mxu0 0.0
    %124 = vmatprep.subr.mxu0 0.0
    %125 = vmatpush1.msra.mxu0 0.0
    %126 = vmatprep.subr.mxu0 0.0
    %127 = vmatpush1.msra.mxu0 0.0
    %128 = vmatprep.subr.mxu0 0.0
    %129 = vmatpush1.msra.mxu0 0.0
    %130 = vmatprep.subr.mxu0 0.0
    %131 = vmatpush1.msra.mxu0 0.0
    %132 = vmatprep.subr.mxu0 0.0
    %133 = vmatpush1.msra.mxu0 0.0
    %134 = vmatprep.subr.mxu0 0.0
    %135 = vmatpush1.msra.mxu0 0.0
    %136 = vmatprep.subr.mxu0 0.0
    %137 = vmatpush1.msra.mxu0 0.0
    %138 = vmatprep.subr.mxu0 0.0
    %139 = vmatpush1.msra.mxu0 0.0
    %140 = vmatprep.subr.mxu0 0.0
    %141 = vmatpush1.msra.mxu0 0.0
    %142 = vmatprep.subr.mxu0 0.0
    %143 = vmatpush1.msra.mxu0 0.0
    %144 = vmatprep.subr.mxu0 0.0
    %145 = vmatpush1.msra.mxu0 0.0
    %146 = vmatprep.subr.mxu0 0.0
    %147 = vmatpush1.msra.mxu0 0.0
    %148 = vmatprep.subr.mxu0 0.0
    %149 = vmatpush1.msra.mxu0 0.0
    %150 = vmatprep.subr.mxu0 0.0
    %151 = vmatpush1.msra.mxu0 0.0
    %152 = vmatprep.subr.mxu0 0.0
    %153 = vmatpush1.msra.mxu0 0.0
    %154 = vmatprep.subr.mxu0 0.0
    %155 = vmatpush1.msra.mxu0 0.0
    %156 = vmatprep.subr.mxu0 0.0
    %157 = vmatpush1.msra.mxu0 0.0
    %158 = vmatprep.subr.mxu0 0.0
    %159 = vmatpush1.msra.mxu0 0.0
    %160 = vmatprep.subr.mxu0 0.0
    %161 = vmatpush1.msra.mxu0 0.0
    %162 = vmatprep.subr.mxu0 0.0
    %163 = vmatpush1.msra.mxu0 0.0
    %164 = vmatprep.subr.mxu0 0.0
    %165 = vmatpush1.msra.mxu0 0.0
    %166 = vmatprep.subr.mxu0 0.0
    %167 = vmatpush1.msra.mxu0 0.0
    %168 = vmatprep.subr.mxu0 0.0
    %169 = vmatpush1.msra.mxu0 0.0
    %170 = vmatprep.subr.mxu0 0.0
    %171 = vmatpush1.msra.mxu0 0.0
    %172 = vmatprep.subr.mxu0 0.0
    %173 = vmatpush1.msra.mxu0 0.0
    %174 = vmatprep.mubr.f32.mxu0 0.0
    %175 = vmatmul.mubr.f32.gmra.mrb[0].mxu0 %v87
    %v176 = vpop.f32.mrb[0].mxu0
    %v177 = vadd.f32 %v83, %v176
    %v178 = vpop.f32.mrb[0].mxu0
    %179 = vmatprep.mubr.f32.mxu0 0.0
    %180 = vmatmul.mubr.f32.gmra.mrb[0].mxu0 %v90
    %v181 = vpop.f32.mrb[0].mxu0
    %v182 = vadd.f32 %v83, %v181
    %v183 = vpop.f32.mrb[0].mxu0
    %184 = vmatprep.mubr.f32.mxu0 0.0
    %185 = vmatmul.mubr.f32.gmra.mrb[0].mxu0 %v93
    %v186 = vpop.f32.mrb[0].mxu0
    %v187 = vadd.f32 %v83, %v186
    %v188 = vpop.f32.mrb[0].mxu0
    %189 = vmatprep.mubr.f32.mxu0 0.0
    %190 = vmatmul.mubr.f32.gmra.mrb[0].mxu0 %v96
    %v191 = vpop.f32.mrb[0].mxu0
    %v192 = vadd.f32 %v83, %v191
    %v193 = vpop.f32.mrb[0].mxu0
    %194 = vmatprep.mubr.f32.mxu0 0.0
    %195 = vmatmul.mubr.f32.gmra.mrb[0].mxu0 %v99
    %v196 = vpop.f32.mrb[0].mxu0
    %v197 = vadd.f32 %v83, %v196
    %v198 = vpop.f32.mrb[0].mxu0
    %199 = vmatprep.mubr.f32.mxu0 0.0
    %200 = vmatmul.mubr.f32.gmra.mrb[0].mxu0 %v102
    %v201 = vpop.f32.mrb[0].mxu0
    %v202 = vadd.f32 %v83, %v201
    %v203 = vpop.f32.mrb[0].mxu0
    %204 = vmatprep.mubr.f32.mxu0 0.0
    %205 = vmatmul.mubr.f32.gmra.mrb[0].mxu0 %v105
    %v206 = vpop.f32.mrb[0].mxu0
    %v207 = vadd.f32 %v83, %v206
    %v208 = vpop.f32.mrb[0].mxu0
    %209 = vmatprep.mubr.f32.mxu0 0.0
    %210 = vmatmul.mubr.f32.gmra.mrb[0].mxu0 %v108
    %v211 = vpop.f32.mrb[0].mxu0
    %v212 = vadd.f32 %v83, %v211
    %v213 = vpop.f32.mrb[0].mxu0
    %214 = vdwg.mxu0
    %215 = vst [vmem:[#allocation2] sm:$0xff] %v177
    %216 = vst [vmem:[#allocation2 + $0x8] sm:$0xff] %v182
    %217 = vst [vmem:[#allocation2 + $0x10] sm:$0xff] %v187
    %218 = vst [vmem:[#allocation2 + $0x18] sm:$0xff] %v192
    %219 = vst [vmem:[#allocation2 + $0x20] sm:$0xff] %v197
    %220 = vst [vmem:[#allocation2 + $0x28] sm:$0xff] %v202
    %221 = vst [vmem:[#allocation2 + $0x30] sm:$0xff] %v207
    %222 = vst [vmem:[#allocation2 + $0x38] sm:$0xff] %v212
    %v223 = vld [vmem:[#allocation10] sm:$0xff]
    %v224 = vld [vmem:[#allocation10 + $0x8] sm:$0xff]
    %v225 = vld [vmem:[#allocation10 + $0x10] sm:$0xff]
    %v226 = vld [vmem:[#allocation10 + $0x18] sm:$0xff]
    %v227 = vld [vmem:[#allocation3] sm:$0xff]
    %v228 = vld [vmem:[#allocation4] sm:$0xff]
    %v229 = vld [vmem:[#allocation2] sm:$0xff]
    %v231 = vsel %vm85, %v227, 0
    %233 = vmatprep.subr.mxu0 0.0
    %234 = vmatpush1.msra.mxu0 %v223
    %235 = vmatprep.subr.mxu0 0.0
    %236 = vmatpush1.msra.mxu0 %v224
    %237 = vmatprep.subr.mxu0 0.0
    %238 = vmatpush1.msra.mxu0 %v225
    %239 = vmatprep.subr.mxu0 0.0
    %240 = vmatpush1.msra.mxu0 %v226
    %241 = vmatprep.subr.mxu0 0.0
    %242 = vmatpush1.msra.mxu0 0.0
    %243 = vmatprep.subr.mxu0 0.0
    %244 = vmatpush1.msra.mxu0 0.0
    %245 = vmatprep.subr.mxu0 0.0
    %246 = vmatpush1.msra.mxu0 0.0
    %247 = vmatprep.subr.mxu0 0.0
    %248 = vmatpush1.msra.mxu0 0.0
    %249 = vmatprep.subr.mxu0 0.0
    %250 = vmatpush1.msra.mxu0 0.0
    %251 = vmatprep.subr.mxu0 0.0
    %252 = vmatpush1.msra.mxu0 0.0
    %253 = vmatprep.subr.mxu0 0.0
    %254 = vmatpush1.msra.mxu0 0.0
    %255 = vmatprep.subr.mxu0 0.0
    %256 = vmatpush1.msra.mxu0 0.0
    %257 = vmatprep.subr.mxu0 0.0
    %258 = vmatpush1.msra.mxu0 0.0
    %259 = vmatprep.subr.mxu0 0.0
    %260 = vmatpush1.msra.mxu0 0.0
    %261 = vmatprep.subr.mxu0 0.0
    %262 = vmatpush1.msra.mxu0 0.0
    %263 = vmatprep.subr.mxu0 0.0
    %264 = vmatpush1.msra.mxu0 0.0
    %265 = vmatprep.subr.mxu0 0.0
    %266 = vmatpush1.msra.mxu0 0.0
    %267 = vmatprep.subr.mxu0 0.0
    %268 = vmatpush1.msra.mxu0 0.0
    %269 = vmatprep.subr.mxu0 0.0
    %270 = vmatpush1.msra.mxu0 0.0
    %271 = vmatprep.subr.mxu0 0.0
    %272 = vmatpush1.msra.mxu0 0.0
    %273 = vmatprep.subr.mxu0 0.0
    %274 = vmatpush1.msra.mxu0 0.0
    %275 = vmatprep.subr.mxu0 0.0
    %276 = vmatpush1.msra.mxu0 0.0
    %277 = vmatprep.subr.mxu0 0.0
    %278 = vmatpush1.msra.mxu0 0.0
    %279 = vmatprep.subr.mxu0 0.0
    %280 = vmatpush1.msra.mxu0 0.0
    %281 = vmatprep.subr.mxu0 0.0
    %282 = vmatpush1.msra.mxu0 0.0
    %283 = vmatprep.subr.mxu0 0.0
    %284 = vmatpush1.msra.mxu0 0.0
    %285 = vmatprep.subr.mxu0 0.0
    %286 = vmatpush1.msra.mxu0 0.0
    %287 = vmatprep.subr.mxu0 0.0
    %288 = vmatpush1.msra.mxu0 0.0
    %289 = vmatprep.subr.mxu0 0.0
    %290 = vmatpush1.msra.mxu0 0.0
    %291 = vmatprep.subr.mxu0 0.0
    %292 = vmatpush1.msra.mxu0 0.0
    %293 = vmatprep.subr.mxu0 0.0
    %294 = vmatpush1.msra.mxu0 0.0
    %295 = vmatprep.subr.mxu0 0.0
    %296 = vmatpush1.msra.mxu0 0.0
    %297 = vmatprep.mubr.f32.mxu0 0.0
    %298 = vmatmul.mubr.f32.gmra.mrb[0].mxu0 %v231
    %v299 = vpop.f32.mrb[0].mxu0
    %v300 = vadd.f32 0.0, %v299
    %v301 = vpop.f32.mrb[0].mxu0
    %302 = vdwg.mxu0
    %v303 = vadd.f32 %v229, %v300
    %v304 = vxor.u32 %v303, 2147483648
    %v305 = vmul.f32 %v304, 1.442695
    %v306 = vpow.pop %v305
    %v307 = vadd.f32 %v306, 1.0
    %v308 = vrcp.pop %v307
    %v309 = vmul.f32 1.0, %v308
    %v310 = vtanh.pop %v303
    %312 = vrot.lane.b32.xlu0 %v228, 32
    %v313 = vpop.permute.xlu0 %312
    %v315 = vmul.f32 %v309, %v313
    %317 = vrot.lane.b32.xlu0 %v310, 64
    %v318 = vpop.permute.xlu0 %317
    %v320 = vmul.f32 %v309, %v318
    %322 = vrot.lane.b32.xlu0 %v320, 32
    %v323 = vpop.permute.xlu0 %322
    %v325 = vadd.f32 %v315, %v323
    %v326 = vtanh.pop %v325
    %328 = vrot.lane.b32.xlu0 %v326, 64
    %v329 = vpop.permute.xlu0 %328
    %v331 = vmul.f32 %v309, %v329
    %s332 = scalar_lea.vmem [#allocation2], 8
    %v333 = vld [vmem:[%s332] sm:$0xff]
    %335 = vrot.lane.b32.xlu0 %v331, 32
    %v336 = vpop.permute.xlu0 %335
    %v337 = vsel %vm85, %v336, 0
    %339 = vmatprep.subr.mxu0 0.0
    %340 = vmatpush1.msra.mxu0 %v223
    %341 = vmatprep.subr.mxu0 0.0
    %342 = vmatpush1.msra.mxu0 %v224
    %343 = vmatprep.subr.mxu0 0.0
    %344 = vmatpush1.msra.mxu0 %v225
    %345 = vmatprep.subr.mxu0 0.0
    %346 = vmatpush1.msra.mxu0 %v226
    %347 = vmatprep.subr.mxu0 0.0
    %348 = vmatpush1.msra.mxu0 0.0
    %349 = vmatprep.subr.mxu0 0.0
    %350 = vmatpush1.msra.mxu0 0.0
    %351 = vmatprep.subr.mxu0 0.0
    %352 = vmatpush1.msra.mxu0 0.0
    %353 = vmatprep.subr.mxu0 0.0
    %354 = vmatpush1.msra.mxu0 0.0
    %355 = vmatprep.subr.mxu0 0.0
    %356 = vmatpush1.msra.mxu0 0.0
    %357 = vmatprep.subr.mxu0 0.0
    %358 = vmatpush1.msra.mxu0 0.0
    %359 = vmatprep.subr.mxu0 0.0
    %360 = vmatpush1.msra.mxu0 0.0
    %361 = vmatprep.subr.mxu0 0.0
    %362 = vmatpush1.msra.mxu0 0.0
    %363 = vmatprep.subr.mxu0 0.0
    %364 = vmatpush1.msra.mxu0 0.0
    %365 = vmatprep.subr.mxu0 0.0
    %366 = vmatpush1.msra.mxu0 0.0
    %367 = vmatprep.subr.mxu0 0.0
    %368 = vmatpush1.msra.mxu0 0.0
    %369 = vmatprep.subr.mxu0 0.0
    %370 = vmatpush1.msra.mxu0 0.0
    %371 = vmatprep.subr.mxu0 0.0
    %372 = vmatpush1.msra.mxu0 0.0
    %373 = vmatprep.subr.mxu0 0.0
    %374 = vmatpush1.msra.mxu0 0.0
    %375 = vmatprep.subr.mxu0 0.0
    %376 = vmatpush1.msra.mxu0 0.0
    %377 = vmatprep.subr.mxu0 0.0
    %378 = vmatpush1.msra.mxu0 0.0
    %379 = vmatprep.subr.mxu0 0.0
    %380 = vmatpush1.msra.mxu0 0.0
    %381 = vmatprep.subr.mxu0 0.0
    %382 = vmatpush1.msra.mxu0 0.0
    %383 = vmatprep.subr.mxu0 0.0
    %384 = vmatpush1.msra.mxu0 0.0
    %385 = vmatprep.subr.mxu0 0.0
    %386 = vmatpush1.msra.mxu0 0.0
    %387 = vmatprep.subr.mxu0 0.0
    %388 = vmatpush1.msra.mxu0 0.0
    %389 = vmatprep.subr.mxu0 0.0
    %390 = vmatpush1.msra.mxu0 0.0
    %391 = vmatprep.subr.mxu0 0.0
    %392 = vmatpush1.msra.mxu0 0.0
    %393 = vmatprep.subr.mxu0 0.0
    %394 = vmatpush1.msra.mxu0 0.0
    %395 = vmatprep.subr.mxu0 0.0
    %396 = vmatpush1.msra.mxu0 0.0
    %397 = vmatprep.subr.mxu0 0.0
    %398 = vmatpush1.msra.mxu0 0.0
    %399 = vmatprep.subr.mxu0 0.0
    %400 = vmatpush1.msra.mxu0 0.0
    %401 = vmatprep.subr.mxu0 0.0
    %402 = vmatpush1.msra.mxu0 0.0
    %403 = vmatprep.mubr.f32.mxu0 0.0
    %404 = vmatmul.mubr.f32.gmra.mrb[0].mxu0 %v337
    %v405 = vpop.f32.mrb[0].mxu0
    %v406 = vadd.f32 0.0, %v405
    %v407 = vpop.f32.mrb[0].mxu0
    %408 = vdwg.mxu0
    %v409 = vadd.f32 %v333, %v406
    %v410 = vxor.u32 %v409, 2147483648
    %v411 = vmul.f32 %v410, 1.442695
    %v412 = vpow.pop %v411
    %v413 = vadd.f32 %v412, 1.0
    %v414 = vrcp.pop %v413
    %v415 = vmul.f32 1.0, %v414
    %v416 = vtanh.pop %v409
    %v417 = vmul.f32 %v415, %v325
    %419 = vrot.lane.b32.xlu0 %v416, 64
    %v420 = vpop.permute.xlu0 %419
    %v422 = vmul.f32 %v415, %v420
    %424 = vrot.lane.b32.xlu0 %v422, 32
    %v425 = vpop.permute.xlu0 %424
    %v427 = vadd.f32 %v417, %v425
    %v428 = vtanh.pop %v427
    %430 = vrot.lane.b32.xlu0 %v428, 64
    %v431 = vpop.permute.xlu0 %430
    %v433 = vmul.f32 %v415, %v431
    %s434 = scalar_lea.vmem [#allocation2], 16
    %v435 = vld [vmem:[%s434] sm:$0xff]
    %437 = vrot.lane.b32.xlu0 %v433, 32
    %v438 = vpop.permute.xlu0 %437
    %v439 = vsel %vm85, %v438, 0
    %441 = vmatprep.subr.mxu0 0.0
    %442 = vmatpush1.msra.mxu0 %v223
    %443 = vmatprep.subr.mxu0 0.0
    %444 = vmatpush1.msra.mxu0 %v224
    %445 = vmatprep.subr.mxu0 0.0
    %446 = vmatpush1.msra.mxu0 %v225
    %447 = vmatprep.subr.mxu0 0.0
    %448 = vmatpush1.msra.mxu0 %v226
    %449 = vmatprep.subr.mxu0 0.0
    %450 = vmatpush1.msra.mxu0 0.0
    %451 = vmatprep.subr.mxu0 0.0
    %452 = vmatpush1.msra.mxu0 0.0
    %453 = vmatprep.subr.mxu0 0.0
    %454 = vmatpush1.msra.mxu0 0.0
    %455 = vmatprep.subr.mxu0 0.0
    %456 = vmatpush1.msra.mxu0 0.0
    %457 = vmatprep.subr.mxu0 0.0
    %458 = vmatpush1.msra.mxu0 0.0
    %459 = vmatprep.subr.mxu0 0.0
    %460 = vmatpush1.msra.mxu0 0.0
    %461 = vmatprep.subr.mxu0 0.0
    %462 = vmatpush1.msra.mxu0 0.0
    %463 = vmatprep.subr.mxu0 0.0
    %464 = vmatpush1.msra.mxu0 0.0
    %465 = vmatprep.subr.mxu0 0.0
    %466 = vmatpush1.msra.mxu0 0.0
    %467 = vmatprep.subr.mxu0 0.0
    %468 = vmatpush1.msra.mxu0 0.0
    %469 = vmatprep.subr.mxu0 0.0
    %470 = vmatpush1.msra.mxu0 0.0
    %471 = vmatprep.subr.mxu0 0.0
    %472 = vmatpush1.msra.mxu0 0.0
    %473 = vmatprep.subr.mxu0 0.0
    %474 = vmatpush1.msra.mxu0 0.0
    %475 = vmatprep.subr.mxu0 0.0
    %476 = vmatpush1.msra.mxu0 0.0
    %477 = vmatprep.subr.mxu0 0.0
    %478 = vmatpush1.msra.mxu0 0.0
    %479 = vmatprep.subr.mxu0 0.0
    %480 = vmatpush1.msra.mxu0 0.0
    %481 = vmatprep.subr.mxu0 0.0
    %482 = vmatpush1.msra.mxu0 0.0
    %483 = vmatprep.subr.mxu0 0.0
    %484 = vmatpush1.msra.mxu0 0.0
    %485 = vmatprep.subr.mxu0 0.0
    %486 = vmatpush1.msra.mxu0 0.0
    %487 = vmatprep.subr.mxu0 0.0
    %488 = vmatpush1.msra.mxu0 0.0
    %489 = vmatprep.subr.mxu0 0.0
    %490 = vmatpush1.msra.mxu0 0.0
    %491 = vmatprep.subr.mxu0 0.0
    %492 = vmatpush1.msra.mxu0 0.0
    %493 = vmatprep.subr.mxu0 0.0
    %494 = vmatpush1.msra.mxu0 0.0
    %495 = vmatprep.subr.mxu0 0.0
    %496 = vmatpush1.msra.mxu0 0.0
    %497 = vmatprep.subr.mxu0 0.0
    %498 = vmatpush1.msra.mxu0 0.0
    %499 = vmatprep.subr.mxu0 0.0
    %500 = vmatpush1.msra.mxu0 0.0
    %501 = vmatprep.subr.mxu0 0.0
    %502 = vmatpush1.msra.mxu0 0.0
    %503 = vmatprep.subr.mxu0 0.0
    %504 = vmatpush1.msra.mxu0 0.0
    %505 = vmatprep.mubr.f32.mxu0 0.0
    %506 = vmatmul.mubr.f32.gmra.mrb[0].mxu0 %v439
    %v507 = vpop.f32.mrb[0].mxu0
    %v508 = vadd.f32 0.0, %v507
    %v509 = vpop.f32.mrb[0].mxu0
    %510 = vdwg.mxu0
    %v511 = vadd.f32 %v435, %v508
    %v512 = vxor.u32 %v511, 2147483648
    %v513 = vmul.f32 %v512, 1.442695
    %v514 = vpow.pop %v513
    %v515 = vadd.f32 %v514, 1.0
    %v516 = vrcp.pop %v515
    %v517 = vmul.f32 1.0, %v516
    %v518 = vtanh.pop %v511
    %v519 = vmul.f32 %v517, %v427
    %521 = vrot.lane.b32.xlu0 %v518, 64
    %v522 = vpop.permute.xlu0 %521
    %v524 = vmul.f32 %v517, %v522
    %526 = vrot.lane.b32.xlu0 %v524, 32
    %v527 = vpop.permute.xlu0 %526
    %v529 = vadd.f32 %v519, %v527
    %v530 = vtanh.pop %v529
    %532 = vrot.lane.b32.xlu0 %v530, 64
    %v533 = vpop.permute.xlu0 %532
    %v535 = vmul.f32 %v517, %v533
    %s536 = scalar_lea.vmem [#allocation2], 24
    %v537 = vld [vmem:[%s536] sm:$0xff]
    %539 = vrot.lane.b32.xlu0 %v535, 32
    %v540 = vpop.permute.xlu0 %539
    %v541 = vsel %vm85, %v540, 0
    %543 = vmatprep.subr.mxu0 0.0
    %544 = vmatpush1.msra.mxu0 %v223
    %545 = vmatprep.subr.mxu0 0.0
    %546 = vmatpush1.msra.mxu0 %v224
    %547 = vmatprep.subr.mxu0 0.0
    %548 = vmatpush1.msra.mxu0 %v225
    %549 = vmatprep.subr.mxu0 0.0
    %550 = vmatpush1.msra.mxu0 %v226
    %551 = vmatprep.subr.mxu0 0.0
    %552 = vmatpush1.msra.mxu0 0.0
    %553 = vmatprep.subr.mxu0 0.0
    %554 = vmatpush1.msra.mxu0 0.0
    %555 = vmatprep.subr.mxu0 0.0
    %556 = vmatpush1.msra.mxu0 0.0
    %557 = vmatprep.subr.mxu0 0.0
    %558 = vmatpush1.msra.mxu0 0.0
    %559 = vmatprep.subr.mxu0 0.0
    %560 = vmatpush1.msra.mxu0 0.0
    %561 = vmatprep.subr.mxu0 0.0
    %562 = vmatpush1.msra.mxu0 0.0
    %563 = vmatprep.subr.mxu0 0.0
    %564 = vmatpush1.msra.mxu0 0.0
    %565 = vmatprep.subr.mxu0 0.0
    %566 = vmatpush1.msra.mxu0 0.0
    %567 = vmatprep.subr.mxu0 0.0
    %568 = vmatpush1.msra.mxu0 0.0
    %569 = vmatprep.subr.mxu0 0.0
    %570 = vmatpush1.msra.mxu0 0.0
    %571 = vmatprep.subr.mxu0 0.0
    %572 = vmatpush1.msra.mxu0 0.0
    %573 = vmatprep.subr.mxu0 0.0
    %574 = vmatpush1.msra.mxu0 0.0
    %575 = vmatprep.subr.mxu0 0.0
    %576 = vmatpush1.msra.mxu0 0.0
    %577 = vmatprep.subr.mxu0 0.0
    %578 = vmatpush1.msra.mxu0 0.0
    %579 = vmatprep.subr.mxu0 0.0
    %580 = vmatpush1.msra.mxu0 0.0
    %581 = vmatprep.subr.mxu0 0.0
    %582 = vmatpush1.msra.mxu0 0.0
    %583 = vmatprep.subr.mxu0 0.0
    %584 = vmatpush1.msra.mxu0 0.0
    %585 = vmatprep.subr.mxu0 0.0
    %586 = vmatpush1.msra.mxu0 0.0
    %587 = vmatprep.subr.mxu0 0.0
    %588 = vmatpush1.msra.mxu0 0.0
    %589 = vmatprep.subr.mxu0 0.0
    %590 = vmatpush1.msra.mxu0 0.0
    %591 = vmatprep.subr.mxu0 0.0
    %592 = vmatpush1.msra.mxu0 0.0
    %593 = vmatprep.subr.mxu0 0.0
    %594 = vmatpush1.msra.mxu0 0.0
    %595 = vmatprep.subr.mxu0 0.0
    %596 = vmatpush1.msra.mxu0 0.0
    %597 = vmatprep.subr.mxu0 0.0
    %598 = vmatpush1.msra.mxu0 0.0
    %599 = vmatprep.subr.mxu0 0.0
    %600 = vmatpush1.msra.mxu0 0.0
    %601 = vmatprep.subr.mxu0 0.0
    %602 = vmatpush1.msra.mxu0 0.0
    %603 = vmatprep.subr.mxu0 0.0
    %604 = vmatpush1.msra.mxu0 0.0
    %605 = vmatprep.subr.mxu0 0.0
    %606 = vmatpush1.msra.mxu0 0.0
    %607 = vmatprep.mubr.f32.mxu0 0.0
    %608 = vmatmul.mubr.f32.gmra.mrb[0].mxu0 %v541
    %v609 = vpop.f32.mrb[0].mxu0
    %v610 = vadd.f32 0.0, %v609
    %v611 = vpop.f32.mrb[0].mxu0
    %612 = vdwg.mxu0
    %v613 = vadd.f32 %v537, %v610
    %v614 = vxor.u32 %v613, 2147483648
    %v615 = vmul.f32 %v614, 1.442695
    %v616 = vpow.pop %v615
    %v617 = vadd.f32 %v616, 1.0
    %v618 = vrcp.pop %v617
    %v619 = vmul.f32 1.0, %v618
    %v620 = vtanh.pop %v613
    %v621 = vmul.f32 %v619, %v529
    %623 = vrot.lane.b32.xlu0 %v620, 64
    %v624 = vpop.permute.xlu0 %623
    %v626 = vmul.f32 %v619, %v624
    %628 = vrot.lane.b32.xlu0 %v626, 32
    %v629 = vpop.permute.xlu0 %628
    %v631 = vadd.f32 %v621, %v629
    %v632 = vtanh.pop %v631
    %634 = vrot.lane.b32.xlu0 %v632, 64
    %v635 = vpop.permute.xlu0 %634
    %v637 = vmul.f32 %v619, %v635
    %s638 = scalar_lea.vmem [#allocation2], 32
    %v639 = vld [vmem:[%s638] sm:$0xff]
    %641 = vrot.lane.b32.xlu0 %v637, 32
    %v642 = vpop.permute.xlu0 %641
    %v643 = vsel %vm85, %v642, 0
    %645 = vmatprep.subr.mxu0 0.0
    %646 = vmatpush1.msra.mxu0 %v223
    %647 = vmatprep.subr.mxu0 0.0
    %648 = vmatpush1.msra.mxu0 %v224
    %649 = vmatprep.subr.mxu0 0.0
    %650 = vmatpush1.msra.mxu0 %v225
    %651 = vmatprep.subr.mxu0 0.0
    %652 = vmatpush1.msra.mxu0 %v226
    %653 = vmatprep.subr.mxu0 0.0
    %654 = vmatpush1.msra.mxu0 0.0
    %655 = vmatprep.subr.mxu0 0.0
    %656 = vmatpush1.msra.mxu0 0.0
    %657 = vmatprep.subr.mxu0 0.0
    %658 = vmatpush1.msra.mxu0 0.0
    %659 = vmatprep.subr.mxu0 0.0
    %660 = vmatpush1.msra.mxu0 0.0
    %661 = vmatprep.subr.mxu0 0.0
    %662 = vmatpush1.msra.mxu0 0.0
    %663 = vmatprep.subr.mxu0 0.0
    %664 = vmatpush1.msra.mxu0 0.0
    %665 = vmatprep.subr.mxu0 0.0
    %666 = vmatpush1.msra.mxu0 0.0
    %667 = vmatprep.subr.mxu0 0.0
    %668 = vmatpush1.msra.mxu0 0.0
    %669 = vmatprep.subr.mxu0 0.0
    %670 = vmatpush1.msra.mxu0 0.0
    %671 = vmatprep.subr.mxu0 0.0
    %672 = vmatpush1.msra.mxu0 0.0
    %673 = vmatprep.subr.mxu0 0.0
    %674 = vmatpush1.msra.mxu0 0.0
    %675 = vmatprep.subr.mxu0 0.0
    %676 = vmatpush1.msra.mxu0 0.0
    %677 = vmatprep.subr.mxu0 0.0
    %678 = vmatpush1.msra.mxu0 0.0
    %679 = vmatprep.subr.mxu0 0.0
    %680 = vmatpush1.msra.mxu0 0.0
    %681 = vmatprep.subr.mxu0 0.0
    %682 = vmatpush1.msra.mxu0 0.0
    %683 = vmatprep.subr.mxu0 0.0
    %684 = vmatpush1.msra.mxu0 0.0
    %685 = vmatprep.subr.mxu0 0.0
    %686 = vmatpush1.msra.mxu0 0.0
    %687 = vmatprep.subr.mxu0 0.0
    %688 = vmatpush1.msra.mxu0 0.0
    %689 = vmatprep.subr.mxu0 0.0
    %690 = vmatpush1.msra.mxu0 0.0
    %691 = vmatprep.subr.mxu0 0.0
    %692 = vmatpush1.msra.mxu0 0.0
    %693 = vmatprep.subr.mxu0 0.0
    %694 = vmatpush1.msra.mxu0 0.0
    %695 = vmatprep.subr.mxu0 0.0
    %696 = vmatpush1.msra.mxu0 0.0
    %697 = vmatprep.subr.mxu0 0.0
    %698 = vmatpush1.msra.mxu0 0.0
    %699 = vmatprep.subr.mxu0 0.0
    %700 = vmatpush1.msra.mxu0 0.0
    %701 = vmatprep.subr.mxu0 0.0
    %702 = vmatpush1.msra.mxu0 0.0
    %703 = vmatprep.subr.mxu0 0.0
    %704 = vmatpush1.msra.mxu0 0.0
    %705 = vmatprep.subr.mxu0 0.0
    %706 = vmatpush1.msra.mxu0 0.0
    %707 = vmatprep.subr.mxu0 0.0
    %708 = vmatpush1.msra.mxu0 0.0
    %709 = vmatprep.mubr.f32.mxu0 0.0
    %710 = vmatmul.mubr.f32.gmra.mrb[0].mxu0 %v643
    %v711 = vpop.f32.mrb[0].mxu0
    %v712 = vadd.f32 0.0, %v711
    %v713 = vpop.f32.mrb[0].mxu0
    %714 = vdwg.mxu0
    %v715 = vadd.f32 %v639, %v712
    %v716 = vxor.u32 %v715, 2147483648
    %v717 = vmul.f32 %v716, 1.442695
    %v718 = vpow.pop %v717
    %v719 = vadd.f32 %v718, 1.0
    %v720 = vrcp.pop %v719
    %v721 = vmul.f32 1.0, %v720
    %v722 = vtanh.pop %v715
    %v723 = vmul.f32 %v721, %v631
    %725 = vrot.lane.b32.xlu0 %v722, 64
    %v726 = vpop.permute.xlu0 %725
    %v728 = vmul.f32 %v721, %v726
    %730 = vrot.lane.b32.xlu0 %v728, 32
    %v731 = vpop.permute.xlu0 %730
    %v733 = vadd.f32 %v723, %v731
    %v734 = vtanh.pop %v733
    %736 = vrot.lane.b32.xlu0 %v734, 64
    %v737 = vpop.permute.xlu0 %736
    %v739 = vmul.f32 %v721, %v737
    %s740 = scalar_lea.vmem [#allocation2], 40
    %v741 = vld [vmem:[%s740] sm:$0xff]
    %743 = vrot.lane.b32.xlu0 %v739, 32
    %v744 = vpop.permute.xlu0 %743
    %v745 = vsel %vm85, %v744, 0
    %747 = vmatprep.subr.mxu0 0.0
    %748 = vmatpush1.msra.mxu0 %v223
    %749 = vmatprep.subr.mxu0 0.0
    %750 = vmatpush1.msra.mxu0 %v224
    %751 = vmatprep.subr.mxu0 0.0
    %752 = vmatpush1.msra.mxu0 %v225
    %753 = vmatprep.subr.mxu0 0.0
    %754 = vmatpush1.msra.mxu0 %v226
    %755 = vmatprep.subr.mxu0 0.0
    %756 = vmatpush1.msra.mxu0 0.0
    %757 = vmatprep.subr.mxu0 0.0
    %758 = vmatpush1.msra.mxu0 0.0
    %759 = vmatprep.subr.mxu0 0.0
    %760 = vmatpush1.msra.mxu0 0.0
    %761 = vmatprep.subr.mxu0 0.0
    %762 = vmatpush1.msra.mxu0 0.0
    %763 = vmatprep.subr.mxu0 0.0
    %764 = vmatpush1.msra.mxu0 0.0
    %765 = vmatprep.subr.mxu0 0.0
    %766 = vmatpush1.msra.mxu0 0.0
    %767 = vmatprep.subr.mxu0 0.0
    %768 = vmatpush1.msra.mxu0 0.0
    %769 = vmatprep.subr.mxu0 0.0
    %770 = vmatpush1.msra.mxu0 0.0
    %771 = vmatprep.subr.mxu0 0.0
    %772 = vmatpush1.msra.mxu0 0.0
    %773 = vmatprep.subr.mxu0 0.0
    %774 = vmatpush1.msra.mxu0 0.0
    %775 = vmatprep.subr.mxu0 0.0
    %776 = vmatpush1.msra.mxu0 0.0
    %777 = vmatprep.subr.mxu0 0.0
    %778 = vmatpush1.msra.mxu0 0.0
    %779 = vmatprep.subr.mxu0 0.0
    %780 = vmatpush1.msra.mxu0 0.0
    %781 = vmatprep.subr.mxu0 0.0
    %782 = vmatpush1.msra.mxu0 0.0
    %783 = vmatprep.subr.mxu0 0.0
    %784 = vmatpush1.msra.mxu0 0.0
    %785 = vmatprep.subr.mxu0 0.0
    %786 = vmatpush1.msra.mxu0 0.0
    %787 = vmatprep.subr.mxu0 0.0
    %788 = vmatpush1.msra.mxu0 0.0
    %789 = vmatprep.subr.mxu0 0.0
    %790 = vmatpush1.msra.mxu0 0.0
    %791 = vmatprep.subr.mxu0 0.0
    %792 = vmatpush1.msra.mxu0 0.0
    %793 = vmatprep.subr.mxu0 0.0
    %794 = vmatpush1.msra.mxu0 0.0
    %795 = vmatprep.subr.mxu0 0.0
    %796 = vmatpush1.msra.mxu0 0.0
    %797 = vmatprep.subr.mxu0 0.0
    %798 = vmatpush1.msra.mxu0 0.0
    %799 = vmatprep.subr.mxu0 0.0
    %800 = vmatpush1.msra.mxu0 0.0
    %801 = vmatprep.subr.mxu0 0.0
    %802 = vmatpush1.msra.mxu0 0.0
    %803 = vmatprep.subr.mxu0 0.0
    %804 = vmatpush1.msra.mxu0 0.0
    %805 = vmatprep.subr.mxu0 0.0
    %806 = vmatpush1.msra.mxu0 0.0
    %807 = vmatprep.subr.mxu0 0.0
    %808 = vmatpush1.msra.mxu0 0.0
    %809 = vmatprep.subr.mxu0 0.0
    %810 = vmatpush1.msra.mxu0 0.0
    %811 = vmatprep.mubr.f32.mxu0 0.0
    %812 = vmatmul.mubr.f32.gmra.mrb[0].mxu0 %v745
    %v813 = vpop.f32.mrb[0].mxu0
    %v814 = vadd.f32 0.0, %v813
    %v815 = vpop.f32.mrb[0].mxu0
    %816 = vdwg.mxu0
    %v817 = vadd.f32 %v741, %v814
    %v818 = vxor.u32 %v817, 2147483648
    %v819 = vmul.f32 %v818, 1.442695
    %v820 = vpow.pop %v819
    %v821 = vadd.f32 %v820, 1.0
    %v822 = vrcp.pop %v821
    %v823 = vmul.f32 1.0, %v822
    %v824 = vtanh.pop %v817
    %v825 = vmul.f32 %v823, %v733
    %827 = vrot.lane.b32.xlu0 %v824, 64
    %v828 = vpop.permute.xlu0 %827
    %v830 = vmul.f32 %v823, %v828
    %832 = vrot.lane.b32.xlu0 %v830, 32
    %v833 = vpop.permute.xlu0 %832
    %v835 = vadd.f32 %v825, %v833
    %v836 = vtanh.pop %v835
    %838 = vrot.lane.b32.xlu0 %v836, 64
    %v839 = vpop.permute.xlu0 %838
    %v841 = vmul.f32 %v823, %v839
    %s842 = scalar_lea.vmem [#allocation2], 48
    %v843 = vld [vmem:[%s842] sm:$0xff]
    %845 = vrot.lane.b32.xlu0 %v841, 32
    %v846 = vpop.permute.xlu0 %845
    %v847 = vsel %vm85, %v846, 0
    %849 = vmatprep.subr.mxu0 0.0
    %850 = vmatpush1.msra.mxu0 %v223
    %851 = vmatprep.subr.mxu0 0.0
    %852 = vmatpush1.msra.mxu0 %v224
    %853 = vmatprep.subr.mxu0 0.0
    %854 = vmatpush1.msra.mxu0 %v225
    %855 = vmatprep.subr.mxu0 0.0
    %856 = vmatpush1.msra.mxu0 %v226
    %857 = vmatprep.subr.mxu0 0.0
    %858 = vmatpush1.msra.mxu0 0.0
    %859 = vmatprep.subr.mxu0 0.0
    %860 = vmatpush1.msra.mxu0 0.0
    %861 = vmatprep.subr.mxu0 0.0
    %862 = vmatpush1.msra.mxu0 0.0
    %863 = vmatprep.subr.mxu0 0.0
    %864 = vmatpush1.msra.mxu0 0.0
    %865 = vmatprep.subr.mxu0 0.0
    %866 = vmatpush1.msra.mxu0 0.0
    %867 = vmatprep.subr.mxu0 0.0
    %868 = vmatpush1.msra.mxu0 0.0
    %869 = vmatprep.subr.mxu0 0.0
    %870 = vmatpush1.msra.mxu0 0.0
    %871 = vmatprep.subr.mxu0 0.0
    %872 = vmatpush1.msra.mxu0 0.0
    %873 = vmatprep.subr.mxu0 0.0
    %874 = vmatpush1.msra.mxu0 0.0
    %875 = vmatprep.subr.mxu0 0.0
    %876 = vmatpush1.msra.mxu0 0.0
    %877 = vmatprep.subr.mxu0 0.0
    %878 = vmatpush1.msra.mxu0 0.0
    %879 = vmatprep.subr.mxu0 0.0
    %880 = vmatpush1.msra.mxu0 0.0
    %881 = vmatprep.subr.mxu0 0.0
    %882 = vmatpush1.msra.mxu0 0.0
    %883 = vmatprep.subr.mxu0 0.0
    %884 = vmatpush1.msra.mxu0 0.0
    %885 = vmatprep.subr.mxu0 0.0
    %886 = vmatpush1.msra.mxu0 0.0
    %887 = vmatprep.subr.mxu0 0.0
    %888 = vmatpush1.msra.mxu0 0.0
    %889 = vmatprep.subr.mxu0 0.0
    %890 = vmatpush1.msra.mxu0 0.0
    %891 = vmatprep.subr.mxu0 0.0
    %892 = vmatpush1.msra.mxu0 0.0
    %893 = vmatprep.subr.mxu0 0.0
    %894 = vmatpush1.msra.mxu0 0.0
    %895 = vmatprep.subr.mxu0 0.0
    %896 = vmatpush1.msra.mxu0 0.0
    %897 = vmatprep.subr.mxu0 0.0
    %898 = vmatpush1.msra.mxu0 0.0
    %899 = vmatprep.subr.mxu0 0.0
    %900 = vmatpush1.msra.mxu0 0.0
    %901 = vmatprep.subr.mxu0 0.0
    %902 = vmatpush1.msra.mxu0 0.0
    %903 = vmatprep.subr.mxu0 0.0
    %904 = vmatpush1.msra.mxu0 0.0
    %905 = vmatprep.subr.mxu0 0.0
    %906 = vmatpush1.msra.mxu0 0.0
    %907 = vmatprep.subr.mxu0 0.0
    %908 = vmatpush1.msra.mxu0 0.0
    %909 = vmatprep.subr.mxu0 0.0
    %910 = vmatpush1.msra.mxu0 0.0
    %911 = vmatprep.subr.mxu0 0.0
    %912 = vmatpush1.msra.mxu0 0.0
    %913 = vmatprep.mubr.f32.mxu0 0.0
    %914 = vmatmul.mubr.f32.gmra.mrb[0].mxu0 %v847
    %v915 = vpop.f32.mrb[0].mxu0
    %v916 = vadd.f32 0.0, %v915
    %v917 = vpop.f32.mrb[0].mxu0
    %918 = vdwg.mxu0
    %v919 = vadd.f32 %v843, %v916
    %v920 = vxor.u32 %v919, 2147483648
    %v921 = vmul.f32 %v920, 1.442695
    %v922 = vpow.pop %v921
    %v923 = vadd.f32 %v922, 1.0
    %v924 = vrcp.pop %v923
    %v925 = vmul.f32 1.0, %v924
    %v926 = vtanh.pop %v919
    %v927 = vmul.f32 %v925, %v835
    %929 = vrot.lane.b32.xlu0 %v926, 64
    %v930 = vpop.permute.xlu0 %929
    %v932 = vmul.f32 %v925, %v930
    %934 = vrot.lane.b32.xlu0 %v932, 32
    %v935 = vpop.permute.xlu0 %934
    %v937 = vadd.f32 %v927, %v935
    %v938 = vtanh.pop %v937
    %940 = vrot.lane.b32.xlu0 %v938, 64
    %v941 = vpop.permute.xlu0 %940
    %v943 = vmul.f32 %v925, %v941
    %s944 = scalar_lea.vmem [#allocation2], 56
    %v945 = vld [vmem:[%s944] sm:$0xff]
    %947 = vrot.lane.b32.xlu0 %v943, 32
    %v948 = vpop.permute.xlu0 %947
    %v949 = vsel %vm85, %v948, 0
    %951 = vmatprep.subr.mxu0 0.0
    %952 = vmatpush1.msra.mxu0 %v223
    %953 = vmatprep.subr.mxu0 0.0
    %954 = vmatpush1.msra.mxu0 %v224
    %955 = vmatprep.subr.mxu0 0.0
    %956 = vmatpush1.msra.mxu0 %v225
    %957 = vmatprep.subr.mxu0 0.0
    %958 = vmatpush1.msra.mxu0 %v226
    %959 = vmatprep.subr.mxu0 0.0
    %960 = vmatpush1.msra.mxu0 0.0
    %961 = vmatprep.subr.mxu0 0.0
    %962 = vmatpush1.msra.mxu0 0.0
    %963 = vmatprep.subr.mxu0 0.0
    %964 = vmatpush1.msra.mxu0 0.0
    %965 = vmatprep.subr.mxu0 0.0
    %966 = vmatpush1.msra.mxu0 0.0
    %967 = vmatprep.subr.mxu0 0.0
    %968 = vmatpush1.msra.mxu0 0.0
    %969 = vmatprep.subr.mxu0 0.0
    %970 = vmatpush1.msra.mxu0 0.0
    %971 = vmatprep.subr.mxu0 0.0
    %972 = vmatpush1.msra.mxu0 0.0
    %973 = vmatprep.subr.mxu0 0.0
    %974 = vmatpush1.msra.mxu0 0.0
    %975 = vmatprep.subr.mxu0 0.0
    %976 = vmatpush1.msra.mxu0 0.0
    %977 = vmatprep.subr.mxu0 0.0
    %978 = vmatpush1.msra.mxu0 0.0
    %979 = vmatprep.subr.mxu0 0.0
    %980 = vmatpush1.msra.mxu0 0.0
    %981 = vmatprep.subr.mxu0 0.0
    %982 = vmatpush1.msra.mxu0 0.0
    %983 = vmatprep.subr.mxu0 0.0
    %984 = vmatpush1.msra.mxu0 0.0
    %985 = vmatprep.subr.mxu0 0.0
    %986 = vmatpush1.msra.mxu0 0.0
    %987 = vmatprep.subr.mxu0 0.0
    %988 = vmatpush1.msra.mxu0 0.0
    %989 = vmatprep.subr.mxu0 0.0
    %990 = vmatpush1.msra.mxu0 0.0
    %991 = vmatprep.subr.mxu0 0.0
    %992 = vmatpush1.msra.mxu0 0.0
    %993 = vmatprep.subr.mxu0 0.0
    %994 = vmatpush1.msra.mxu0 0.0
    %995 = vmatprep.subr.mxu0 0.0
    %996 = vmatpush1.msra.mxu0 0.0
    %997 = vmatprep.subr.mxu0 0.0
    %998 = vmatpush1.msra.mxu0 0.0
    %999 = vmatprep.subr.mxu0 0.0
    %1000 = vmatpush1.msra.mxu0 0.0
    %1001 = vmatprep.subr.mxu0 0.0
    %1002 = vmatpush1.msra.mxu0 0.0
    %1003 = vmatprep.subr.mxu0 0.0
    %1004 = vmatpush1.msra.mxu0 0.0
    %1005 = vmatprep.subr.mxu0 0.0
    %1006 = vmatpush1.msra.mxu0 0.0
    %1007 = vmatprep.subr.mxu0 0.0
    %1008 = vmatpush1.msra.mxu0 0.0
    %1009 = vmatprep.subr.mxu0 0.0
    %1010 = vmatpush1.msra.mxu0 0.0
    %1011 = vmatprep.subr.mxu0 0.0
    %1012 = vmatpush1.msra.mxu0 0.0
    %1013 = vmatprep.subr.mxu0 0.0
    %1014 = vmatpush1.msra.mxu0 0.0
    %1015 = vmatprep.mubr.f32.mxu0 0.0
    %1016 = vmatmul.mubr.f32.gmra.mrb[0].mxu0 %v949
    %v1017 = vpop.f32.mrb[0].mxu0
    %v1018 = vadd.f32 0.0, %v1017
    %v1019 = vpop.f32.mrb[0].mxu0
    %1020 = vdwg.mxu0
    %v1021 = vadd.f32 %v945, %v1018
    %v1022 = vxor.u32 %v1021, 2147483648
    %v1023 = vmul.f32 %v1022, 1.442695
    %v1024 = vpow.pop %v1023
    %v1025 = vadd.f32 %v1024, 1.0
    %v1026 = vrcp.pop %v1025
    %v1027 = vmul.f32 1.0, %v1026
    %v1028 = vtanh.pop %v1021
    %v1029 = vmul.f32 %v1027, %v937
    %1031 = vrot.lane.b32.xlu0 %v1028, 64
    %v1032 = vpop.permute.xlu0 %1031
    %v1034 = vmul.f32 %v1027, %v1032
    %1036 = vrot.lane.b32.xlu0 %v1034, 32
    %v1037 = vpop.permute.xlu0 %1036
    %v1039 = vadd.f32 %v1029, %v1037
    %v1040 = vtanh.pop %v1039
    %1042 = vrot.lane.b32.xlu0 %v1040, 64
    %v1043 = vpop.permute.xlu0 %1042
    %v1045 = vmul.f32 %v1027, %v1043
    %1047 = vrot.lane.b32.xlu0 %v1045, 32
    %v1048 = vpop.permute.xlu0 %1047
    %1050 = vst.msk [vmem:[#allocation3] sm:$0xff] %vm85, %v1048
    %1052 = vrot.lane.b32.xlu0 %v1039, 96
    %v1053 = vpop.permute.xlu0 %1052
    %1055 = vst.msk [vmem:[#allocation4] sm:$0xff] %vm85, %v1053
    %1056 = vst.msk [vmem:[#allocation11] sm:$0xff] %vm85, %v1048
    // Predicated region
    $region34: #{tpu_custom_call.1} parent=1 // pred_check
      _
    $region35: #{tpu_custom_call.1} parent=1 // pred_check_branch
      %1058 = sbr.rel (0) target = $region37
    $region36: #{tpu_custom_call.1} parent=1 // pred_region
      %s1060 = ssub.s32 128, 128
      %1061 = vsyncadd [#allocation7], %s1060
      %s1063 = sshll.u32 [#allocation11], 4
      %s1064 = int_to_ptr.vmem [resolvable:$true] %s1063
      %1066 = dma.vmem_to_hbm [thread:$0]  %s1064, 128, %s4, [#allocation7]
    $region37: #{tpu_custom_call.1} parent=1 // pred_fallthru
      _
    // Predicated region
    $region38: #{tpu_custom_call.1} parent=1 // pred_check
      _
    $region39: #{tpu_custom_call.1} parent=1 // pred_check_branch
      %1068 = sbr.rel (0) target = $region41
    $region40: #{tpu_custom_call.1} parent=1 // pred_region
      %1069 = dma.done [#allocation7], 128
    $region41: #{tpu_custom_call.1} parent=1 // pred_fallthru
      _
    %1070 = vsyncpa [#allocation6], 1
    %1071 = vsyncpa [#allocation9], 1
    %1072 = vsyncpa [#allocation7], 1

</llo_original>
